<compile_context>
chip_gen: v7x
topology: tpu7x:2x2x1
jax: 0.10.0
libtpu: 0.0.40
codegen_flags: <defaults>
</compile_context>

<pallas_src>
import functools
import math

import jax
import jax.numpy as jnp
from jax.experimental import pallas as pl
from jax.experimental.pallas import tpu as pltpu


def _cross_attn_kernel(txt_ref, img_ref, imgt_ref,
                       wq_ref, wkb_ref, wv_ref, wo_ref,
                       bq_ref, bkT_ref, bv_ref, bo_ref,
                       gamma_ref, beta_ref,
                       out_ref,
                       *, num_heads: int, eps: float, approx_recip: bool):
    bb, tq, hsz = txt_ref.shape
    _, tk, _ = img_ref.shape
    hd = hsz // num_heads

    # Flatten batch onto sublanes (leading-dim merge: layout free).
    txt = txt_ref[...].astype(jnp.float32).reshape(bb * tq, hsz)    # (bb*Tq, H)
    img = img_ref[...].astype(jnp.float32).reshape(bb * tk, hsz)    # (bb*Tk, H)
    imgt = imgt_ref[...].astype(jnp.float32)                        # (bb, H, Tk)

    # ---- fused wide projections (once, outside the head loop) ---------------
    # Q: 1/sqrt(hd) already folded into wq/bq at trace time.
    q_all = jnp.dot(txt, wq_ref[...], preferred_element_type=jnp.float32) + bq_ref[...]
    # V: all heads at once.
    v_all = jnp.dot(img, wv_ref[...], preferred_element_type=jnp.float32) + bv_ref[...]
    # K produced directly in transposed (B, H, Tk) layout: kT[b] = Wk @ img[b]^T + bk[:,None].
    # (wkb_ref already carries the batch dim so this is a natural batched matmul.)
    kT_all = jnp.einsum('bdh,bht->bdt', wkb_ref[...], imgt,
                        preferred_element_type=jnp.float32) + bkT_ref[...]   # (bb, H, Tk)

    acc = jnp.zeros((bb * tq, hsz), jnp.float32)

    # Static head loop (num_heads=4): per-head tensors are cheap static slices of the
    # fused projection results; no per-head projection matmuls, no concat afterwards.
    for h in range(num_heads):
        sl = slice(h * hd, (h + 1) * hd)
        qh = q_all[:, sl].reshape(bb, tq, hd)     # 8-lane slice + leading-dim split
        vh = v_all[:, sl].reshape(bb, tk, hd)
        khT = kT_all[:, sl, :]                    # aligned 8-sublane slice -> (bb, hd, Tk)

        # Scores: natural [M,K]x[K,N] batched contraction, no implicit transpose.
        s = jnp.einsum('bqd,bdk->bqk', qh, khT,
                       preferred_element_type=jnp.float32)        # (bb, Tq, Tk)

        m = jnp.max(s, axis=-1, keepdims=True)
        p = jnp.exp(s - m)                                        # un-normalized
        l = jnp.sum(p, axis=-1, keepdims=True)

        oh = jnp.einsum('bqk,bkd->bqd', p, vh,
                        preferred_element_type=jnp.float32)        # (bb, Tq, hd)
        # Deferred normalization: scale the (Tq, hd) output, not the (Tq, Tk) probs.
        oh = oh * pl.reciprocal(l, approx=approx_recip)

        # Fold this head directly through its slice of the output projection.
        acc = acc + jnp.dot(oh.reshape(bb * tq, hd), wo_ref[h],
                            preferred_element_type=jnp.float32)    # (bb*Tq, H)

    # Residual + output-projection bias + LayerNorm over the hidden axis (f32).
    x = txt + acc + bo_ref[...]
    mean = jnp.mean(x, axis=-1, keepdims=True)
    var = jnp.mean((x - mean) ** 2, axis=-1, keepdims=True)
    y = (x - mean) * jax.lax.rsqrt(var + eps)
    y = y * gamma_ref[...] + beta_ref[...]

    out_ref[...] = y.reshape(bb, tq, hsz).astype(out_ref.dtype)


def cross_attention(txt_emb, img_features, params, *,
                    num_heads: int, eps: float = 1e-5,
                    num_blocks: int = 1, approx_recip: bool = True):
    """txt_emb: (B, Tq, H), img_features: (B, Tk, H) -> (B, Tq, H).

    num_blocks=1 (default) collapses the batch into a single kernel invocation — the right
    choice at small per-call work on every generation (the ~0.35 us per-grid-step overhead
    exceeds the body here). Use num_blocks=2 only on v7x when B_blk*Tq is large enough
    (hundreds of sublane rows) to be worth splitting across its two TensorCores.
    """
    B, Tq, H = txt_emb.shape
    _, Tk, _ = img_features.shape
    assert H % num_heads == 0
    assert B % num_blocks == 0
    hd = H // num_heads
    B_blk = B // num_blocks
    scale = 1.0 / math.sqrt(hd)

    # ---- wrapper-side layout plumbing (outside the kernel; tiny XLA ops) ----
    img_t = jnp.transpose(img_features, (0, 2, 1))                   # (B, H, Tk) for K^T
    wq_t = params["wq"].T * scale                                    # (H, H), scale folded
    wv_t = params["wv"].T                                            # (H, H)
    # K weight with a batch dim so the in-kernel K^T projection is a plain batched matmul.
    wk_b = jnp.broadcast_to(params["wk"][None, :, :], (B_blk, H, H))
    # Output projection split by head: (NH, hd, H) so attn @ Wo^T = sum_h o_h @ wo_h.
    wo_h = jnp.transpose(params["wo"].reshape(H, num_heads, hd), (1, 2, 0))

    bq = (params["bq"] * scale).reshape(1, H)
    bkT = params["bk"].reshape(H, 1)            # column layout: added along K^T sublanes
    bv = params["bv"].reshape(1, H)
    bo = params["bo"].reshape(1, H)
    gamma = params["gamma"].reshape(1, H)
    beta = params["beta"].reshape(1, H)

    kernel = functools.partial(_cross_attn_kernel, num_heads=num_heads,
                               eps=eps, approx_recip=approx_recip)

    txt_spec = pl.BlockSpec((B_blk, Tq, H), lambda i: (i, 0, 0))
    img_spec = pl.BlockSpec((B_blk, Tk, H), lambda i: (i, 0, 0))
    imgt_spec = pl.BlockSpec((B_blk, H, Tk), lambda i: (i, 0, 0))
    w2_spec = pl.BlockSpec((H, H), lambda i: (0, 0))
    wkb_spec = pl.BlockSpec((B_blk, H, H), lambda i: (0, 0, 0))
    wo_spec = pl.BlockSpec((num_heads, hd, H), lambda i: (0, 0, 0))
    row_spec = pl.BlockSpec((1, H), lambda i: (0, 0))
    col_spec = pl.BlockSpec((H, 1), lambda i: (0, 0))

    return pl.pallas_call(
        kernel,
        out_shape=jax.ShapeDtypeStruct((B, Tq, H), txt_emb.dtype),
        grid_spec=pltpu.PrefetchScalarGridSpec(
            num_scalar_prefetch=0,
            grid=(num_blocks,),
            in_specs=[txt_spec, img_spec, imgt_spec,
                      w2_spec, wkb_spec, w2_spec, wo_spec,
                      row_spec, col_spec, row_spec, row_spec,
                      row_spec, row_spec],
            out_specs=txt_spec,
        ),
        compiler_params=pltpu.CompilerParams(
            dimension_semantics=("parallel",)),
    )(txt_emb, img_features, img_t,
      wq_t, wk_b, wv_t, wo_h,
      bq, bkT, bv, bo,
      gamma, beta)


def _reference(txt_emb, img_features, params, *, num_heads: int, eps: float = 1e-5):
    """Pure-JAX reference matching nn.MultiheadAttention + residual + LayerNorm."""
    B, Tq, H = txt_emb.shape
    hd = H // num_heads
    q = txt_emb @ params["wq"].T + params["bq"]
    k = img_features @ params["wk"].T + params["bk"]
    v = img_features @ params["wv"].T + params["bv"]

    def split(x):  # (B, T, H) -> (B, nh, T, hd)
        return x.reshape(B, -1, num_heads, hd).transpose(0, 2, 1, 3)

    qh, kh, vh = split(q), split(k), split(v)
    scores = jnp.einsum("bhqd,bhkd->bhqk", qh, kh) / math.sqrt(hd)
    p = jax.nn.softmax(scores, axis=-1)
    o = jnp.einsum("bhqk,bhkd->bhqd", p, vh).transpose(0, 2, 1, 3).reshape(B, -1, H)
    attn_out = o @ params["wo"].T + params["bo"]
    x = txt_emb + attn_out
    mean = jnp.mean(x, axis=-1, keepdims=True)
    var = jnp.mean((x - mean) ** 2, axis=-1, keepdims=True)
    return (x - mean) / jnp.sqrt(var + eps) * params["gamma"] + params["beta"]


if __name__ == "__main__":
    B, Tq, Tk, H, NH = 2, 8, 16, 32, 4   # Tk = 4x4 image feature map flattened

    key = jax.random.PRNGKey(0)
    keys = jax.random.split(key, 10)

    txt_emb = jax.random.normal(keys[0], (B, Tq, H), dtype=jnp.float32)
    img_features = jax.random.normal(keys[1], (B, Tk, H), dtype=jnp.float32)

    scale = 1.0 / math.sqrt(H)
    params = {
        # in_proj (q/k/v) and out_proj weights of nn.MultiheadAttention, shape (H, H)
        "wq": jax.random.normal(keys[2], (H, H), jnp.float32) * scale,
        "wk": jax.random.normal(keys[3], (H, H), jnp.float32) * scale,
        "wv": jax.random.normal(keys[4], (H, H), jnp.float32) * scale,
        "wo": jax.random.normal(keys[5], (H, H), jnp.float32) * scale,
        "bq": jax.random.normal(keys[6], (H,), jnp.float32) * 0.01,
        "bk": jax.random.normal(keys[7], (H,), jnp.float32) * 0.01,
        "bv": jax.random.normal(keys[8], (H,), jnp.float32) * 0.01,
        "bo": jax.random.normal(keys[9], (H,), jnp.float32) * 0.01,
        # LayerNorm default init: weight=1, bias=0
        "gamma": jnp.ones((H,), jnp.float32),
        "beta": jnp.zeros((H,), jnp.float32),
    }

    ref = _reference(txt_emb, img_features, params, num_heads=NH)

    # Default path: whole batch in one grid step (best on v5e/v6e and at this size on v7x).
    out = cross_attention(txt_emb, img_features, params, num_heads=NH)
    out = jax.block_until_ready(out)
    assert out.shape == (B, Tq, H)
    # approx=True softmax reciprocal -> slightly looser tolerance than bit-exact.
    assert jnp.allclose(out, ref, atol=2e-3, rtol=2e-3), "mismatch vs reference"

    print("KERNEL_OK")
</pallas_src>

<mosaic_0001>
module attributes {stable_mosaic.version = 11 : i64} {
  func.func @_cross_attn_kernel(%arg0: i32, %arg1: memref<2x8x32xf32, #tpu.memory_space<vmem>>, %arg2: memref<2x16x32xf32, #tpu.memory_space<vmem>>, %arg3: memref<2x32x16xf32, #tpu.memory_space<vmem>>, %arg4: memref<32x32xf32, #tpu.memory_space<vmem>>, %arg5: memref<2x32x32xf32, #tpu.memory_space<vmem>>, %arg6: memref<32x32xf32, #tpu.memory_space<vmem>>, %arg7: memref<4x8x32xf32, #tpu.memory_space<vmem>>, %arg8: memref<1x32xf32, #tpu.memory_space<vmem>>, %arg9: memref<32x1xf32, #tpu.memory_space<vmem>>, %arg10: memref<1x32xf32, #tpu.memory_space<vmem>>, %arg11: memref<1x32xf32, #tpu.memory_space<vmem>>, %arg12: memref<1x32xf32, #tpu.memory_space<vmem>>, %arg13: memref<1x32xf32, #tpu.memory_space<vmem>>, %arg14: memref<2x8x32xf32, #tpu.memory_space<vmem>>) attributes {dimension_semantics = [#tpu.dimension_semantics<parallel>], iteration_bounds = array<i64: 1>, scalar_prefetch = 0 : i64, scratch_operands = 0 : i64, tpu.core_type = #tpu.core_type<tc>, window_params = [{transform_indices = @transform_0, window_bounds = array<i64: 2, 8, 32>}, {transform_indices = @transform_1, window_bounds = array<i64: 2, 16, 32>}, {transform_indices = @transform_2, window_bounds = array<i64: 2, 32, 16>}, {pipeline_mode = #tpu.pipeline_mode<synchronous>, transform_indices = @transform_3, window_bounds = array<i64: 32, 32>}, {pipeline_mode = #tpu.pipeline_mode<synchronous>, transform_indices = @transform_4, window_bounds = array<i64: 2, 32, 32>}, {pipeline_mode = #tpu.pipeline_mode<synchronous>, transform_indices = @transform_5, window_bounds = array<i64: 32, 32>}, {pipeline_mode = #tpu.pipeline_mode<synchronous>, transform_indices = @transform_6, window_bounds = array<i64: 4, 8, 32>}, {pipeline_mode = #tpu.pipeline_mode<synchronous>, transform_indices = @transform_7, window_bounds = array<i64: 1, 32>}, {pipeline_mode = #tpu.pipeline_mode<synchronous>, transform_indices = @transform_8, window_bounds = array<i64: 32, 1>}, {pipeline_mode = #tpu.pipeline_mode<synchronous>, transform_indices = @transform_9, window_bounds = array<i64: 1, 32>}, {pipeline_mode = #tpu.pipeline_mode<synchronous>, transform_indices = @transform_10, window_bounds = array<i64: 1, 32>}, {pipeline_mode = #tpu.pipeline_mode<synchronous>, transform_indices = @transform_11, window_bounds = array<i64: 1, 32>}, {pipeline_mode = #tpu.pipeline_mode<synchronous>, transform_indices = @transform_12, window_bounds = array<i64: 1, 32>}, {transform_indices = @transform_13, window_bounds = array<i64: 2, 8, 32>}]} {
    %c0 = arith.constant 0 : index
    %c0_0 = arith.constant 0 : index
    %c0_1 = arith.constant 0 : index
    %0 = vector.load %arg1[%c0, %c0_0, %c0_1] : memref<2x8x32xf32, #tpu.memory_space<vmem>>, vector<2x8x32xf32>
    %1 = vector.shape_cast %0 : vector<2x8x32xf32> to vector<16x32xf32>
    %c0_2 = arith.constant 0 : index
    %c0_3 = arith.constant 0 : index
    %c0_4 = arith.constant 0 : index
    %2 = vector.load %arg2[%c0_2, %c0_3, %c0_4] : memref<2x16x32xf32, #tpu.memory_space<vmem>>, vector<2x16x32xf32>
    %3 = vector.shape_cast %2 : vector<2x16x32xf32> to vector<32x32xf32>
    %c0_5 = arith.constant 0 : index
    %c0_6 = arith.constant 0 : index
    %c0_7 = arith.constant 0 : index
    %4 = vector.load %arg3[%c0_5, %c0_6, %c0_7] : memref<2x32x16xf32, #tpu.memory_space<vmem>>, vector<2x32x16xf32>
    %c0_8 = arith.constant 0 : index
    %c0_9 = arith.constant 0 : index
    %5 = vector.load %arg4[%c0_8, %c0_9] : memref<32x32xf32, #tpu.memory_space<vmem>>, vector<32x32xf32>
    %cst = arith.constant dense<0.000000e+00> : vector<16x32xf32>
    %6 = tpu.matmul %1, %5, %cst {dimension_numbers = #tpu.dot_dimension_numbers<[1], [0], [0], [1], [0, 0, 1, 1], [], []>} : vector<16x32xf32>, vector<32x32xf32>, vector<16x32xf32> -> vector<16x32xf32>
    %c0_10 = arith.constant 0 : index
    %c0_11 = arith.constant 0 : index
    %7 = vector.load %arg8[%c0_10, %c0_11] : memref<1x32xf32, #tpu.memory_space<vmem>>, vector<1x32xf32>
    %8 = vector.broadcast %7 : vector<1x32xf32> to vector<16x32xf32>
    %9 = arith.addf %6, %8 : vector<16x32xf32>
    %c0_12 = arith.constant 0 : index
    %c0_13 = arith.constant 0 : index
    %10 = vector.load %arg6[%c0_12, %c0_13] : memref<32x32xf32, #tpu.memory_space<vmem>>, vector<32x32xf32>
    %cst_14 = arith.constant dense<0.000000e+00> : vector<32x32xf32>
    %11 = tpu.matmul %3, %10, %cst_14 {dimension_numbers = #tpu.dot_dimension_numbers<[1], [0], [0], [1], [0, 0, 1, 1], [], []>} : vector<32x32xf32>, vector<32x32xf32>, vector<32x32xf32> -> vector<32x32xf32>
    %c0_15 = arith.constant 0 : index
    %c0_16 = arith.constant 0 : index
    %12 = vector.load %arg10[%c0_15, %c0_16] : memref<1x32xf32, #tpu.memory_space<vmem>>, vector<1x32xf32>
    %13 = vector.broadcast %12 : vector<1x32xf32> to vector<32x32xf32>
    %14 = arith.addf %11, %13 : vector<32x32xf32>
    %c0_17 = arith.constant 0 : index
    %c0_18 = arith.constant 0 : index
    %c0_19 = arith.constant 0 : index
    %15 = vector.load %arg5[%c0_17, %c0_18, %c0_19] : memref<2x32x32xf32, #tpu.memory_space<vmem>>, vector<2x32x32xf32>
    "tpu.trace_start"() <{level = 10 : i32, message = "bdh,bht->bdt"}> : () -> ()
    %cst_20 = arith.constant dense<0.000000e+00> : vector<2x32x16xf32>
    %16 = tpu.matmul %15, %4, %cst_20 {dimension_numbers = #tpu.dot_dimension_numbers<[2], [1], [1], [2], [0, 0, 0, 1, 1, 2], [0], [0]>} : vector<2x32x32xf32>, vector<2x32x16xf32>, vector<2x32x16xf32> -> vector<2x32x16xf32>
    "tpu.trace_stop"() : () -> ()
    %c0_21 = arith.constant 0 : index
    %c0_22 = arith.constant 0 : index
    %17 = vector.load %arg9[%c0_21, %c0_22] : memref<32x1xf32, #tpu.memory_space<vmem>>, vector<32x1xf32>
    %18 = vector.shape_cast %17 : vector<32x1xf32> to vector<1x32x1xf32>
    %19 = vector.broadcast %18 : vector<1x32x1xf32> to vector<2x32x16xf32>
    %20 = arith.addf %16, %19 : vector<2x32x16xf32>
    %cst_23 = arith.constant 0.000000e+00 : f32
    %21 = vector.broadcast %cst_23 : f32 to vector<16x32xf32>
    %22 = vector.extract_strided_slice %9 {offsets = [0, 0], sizes = [16, 8], strides = [1, 1]} : vector<16x32xf32> to vector<16x8xf32>
    %23 = vector.shape_cast %22 : vector<16x8xf32> to vector<2x8x8xf32>
    %24 = vector.extract_strided_slice %14 {offsets = [0, 0], sizes = [32, 8], strides = [1, 1]} : vector<32x32xf32> to vector<32x8xf32>
    %25 = vector.shape_cast %24 : vector<32x8xf32> to vector<2x16x8xf32>
    %26 = vector.extract_strided_slice %20 {offsets = [0, 0, 0], sizes = [2, 8, 16], strides = [1, 1, 1]} : vector<2x32x16xf32> to vector<2x8x16xf32>
    "tpu.trace_start"() <{level = 10 : i32, message = "bqd,bdk->bqk"}> : () -> ()
    %cst_24 = arith.constant dense<0.000000e+00> : vector<2x8x16xf32>
    %27 = tpu.matmul %23, %26, %cst_24 {dimension_numbers = #tpu.dot_dimension_numbers<[2], [1], [1], [2], [0, 0, 0, 1, 1, 2], [0], [0]>} : vector<2x8x8xf32>, vector<2x8x16xf32>, vector<2x8x16xf32> -> vector<2x8x16xf32>
    "tpu.trace_stop"() : () -> ()
    %cst_25 = arith.constant dense<0xFF800000> : vector<2x8xf32>
    %28 = vector.multi_reduction <maximumf>, %27, %cst_25 [2] : vector<2x8x16xf32> to vector<2x8xf32>
    %29 = vector.shape_cast %28 : vector<2x8xf32> to vector<2x8x1xf32>
    %30 = vector.broadcast %29 : vector<2x8x1xf32> to vector<2x8x16xf32>
    %31 = arith.subf %27, %30 : vector<2x8x16xf32>
    %32 = math.exp %31 : vector<2x8x16xf32>
    %cst_26 = arith.constant dense<0.000000e+00> : vector<2x8xf32>
    %33 = vector.multi_reduction <add>, %32, %cst_26 [2] : vector<2x8x16xf32> to vector<2x8xf32>
    %34 = vector.shape_cast %33 : vector<2x8xf32> to vector<2x8x1xf32>
    "tpu.trace_start"() <{level = 10 : i32, message = "bqk,bkd->bqd"}> : () -> ()
    %cst_27 = arith.constant dense<0.000000e+00> : vector<2x8x8xf32>
    %35 = tpu.matmul %32, %25, %cst_27 {dimension_numbers = #tpu.dot_dimension_numbers<[2], [1], [1], [2], [0, 0, 0, 1, 1, 2], [0], [0]>} : vector<2x8x16xf32>, vector<2x16x8xf32>, vector<2x8x8xf32> -> vector<2x8x8xf32>
    "tpu.trace_stop"() : () -> ()
    %36 = tpu.reciprocal %34 {approx = true} : vector<2x8x1xf32> -> vector<2x8x1xf32>
    %37 = vector.broadcast %36 : vector<2x8x1xf32> to vector<2x8x8xf32>
    %38 = arith.mulf %35, %37 : vector<2x8x8xf32>
    %39 = vector.shape_cast %38 : vector<2x8x8xf32> to vector<16x8xf32>
    %c0_28 = arith.constant 0 : index
    %c0_29 = arith.constant 0 : index
    %c0_30 = arith.constant 0 : index
    %40 = vector.load %arg7[%c0_28, %c0_29, %c0_30] : memref<4x8x32xf32, #tpu.memory_space<vmem>>, vector<1x8x32xf32>
    %41 = vector.shape_cast %40 : vector<1x8x32xf32> to vector<8x32xf32>
    %cst_31 = arith.constant dense<0.000000e+00> : vector<16x32xf32>
    %42 = tpu.matmul %39, %41, %cst_31 {dimension_numbers = #tpu.dot_dimension_numbers<[1], [0], [0], [1], [0, 0, 1, 1], [], []>} : vector<16x8xf32>, vector<8x32xf32>, vector<16x32xf32> -> vector<16x32xf32>
    %43 = arith.addf %21, %42 : vector<16x32xf32>
    %44 = vector.extract_strided_slice %9 {offsets = [0, 8], sizes = [16, 8], strides = [1, 1]} : vector<16x32xf32> to vector<16x8xf32>
    %45 = vector.shape_cast %44 : vector<16x8xf32> to vector<2x8x8xf32>
    %46 = vector.extract_strided_slice %14 {offsets = [0, 8], sizes = [32, 8], strides = [1, 1]} : vector<32x32xf32> to vector<32x8xf32>
    %47 = vector.shape_cast %46 : vector<32x8xf32> to vector<2x16x8xf32>
    %48 = vector.extract_strided_slice %20 {offsets = [0, 8, 0], sizes = [2, 8, 16], strides = [1, 1, 1]} : vector<2x32x16xf32> to vector<2x8x16xf32>
    "tpu.trace_start"() <{level = 10 : i32, message = "bqd,bdk->bqk"}> : () -> ()
    %cst_32 = arith.constant dense<0.000000e+00> : vector<2x8x16xf32>
    %49 = tpu.matmul %45, %48, %cst_32 {dimension_numbers = #tpu.dot_dimension_numbers<[2], [1], [1], [2], [0, 0, 0, 1, 1, 2], [0], [0]>} : vector<2x8x8xf32>, vector<2x8x16xf32>, vector<2x8x16xf32> -> vector<2x8x16xf32>
    "tpu.trace_stop"() : () -> ()
    %cst_33 = arith.constant dense<0xFF800000> : vector<2x8xf32>
    %50 = vector.multi_reduction <maximumf>, %49, %cst_33 [2] : vector<2x8x16xf32> to vector<2x8xf32>
    %51 = vector.shape_cast %50 : vector<2x8xf32> to vector<2x8x1xf32>
    %52 = vector.broadcast %51 : vector<2x8x1xf32> to vector<2x8x16xf32>
    %53 = arith.subf %49, %52 : vector<2x8x16xf32>
    %54 = math.exp %53 : vector<2x8x16xf32>
    %cst_34 = arith.constant dense<0.000000e+00> : vector<2x8xf32>
    %55 = vector.multi_reduction <add>, %54, %cst_34 [2] : vector<2x8x16xf32> to vector<2x8xf32>
    %56 = vector.shape_cast %55 : vector<2x8xf32> to vector<2x8x1xf32>
    "tpu.trace_start"() <{level = 10 : i32, message = "bqk,bkd->bqd"}> : () -> ()
    %cst_35 = arith.constant dense<0.000000e+00> : vector<2x8x8xf32>
    %57 = tpu.matmul %54, %47, %cst_35 {dimension_numbers = #tpu.dot_dimension_numbers<[2], [1], [1], [2], [0, 0, 0, 1, 1, 2], [0], [0]>} : vector<2x8x16xf32>, vector<2x16x8xf32>, vector<2x8x8xf32> -> vector<2x8x8xf32>
    "tpu.trace_stop"() : () -> ()
    %58 = tpu.reciprocal %56 {approx = true} : vector<2x8x1xf32> -> vector<2x8x1xf32>
    %59 = vector.broadcast %58 : vector<2x8x1xf32> to vector<2x8x8xf32>
    %60 = arith.mulf %57, %59 : vector<2x8x8xf32>
    %61 = vector.shape_cast %60 : vector<2x8x8xf32> to vector<16x8xf32>
    %c1 = arith.constant 1 : index
    %c0_36 = arith.constant 0 : index
    %c0_37 = arith.constant 0 : index
    %62 = vector.load %arg7[%c1, %c0_36, %c0_37] : memref<4x8x32xf32, #tpu.memory_space<vmem>>, vector<1x8x32xf32>
    %63 = vector.shape_cast %62 : vector<1x8x32xf32> to vector<8x32xf32>
    %cst_38 = arith.constant dense<0.000000e+00> : vector<16x32xf32>
    %64 = tpu.matmul %61, %63, %cst_38 {dimension_numbers = #tpu.dot_dimension_numbers<[1], [0], [0], [1], [0, 0, 1, 1], [], []>} : vector<16x8xf32>, vector<8x32xf32>, vector<16x32xf32> -> vector<16x32xf32>
    %65 = arith.addf %43, %64 : vector<16x32xf32>
    %66 = vector.extract_strided_slice %9 {offsets = [0, 16], sizes = [16, 8], strides = [1, 1]} : vector<16x32xf32> to vector<16x8xf32>
    %67 = vector.shape_cast %66 : vector<16x8xf32> to vector<2x8x8xf32>
    %68 = vector.extract_strided_slice %14 {offsets = [0, 16], sizes = [32, 8], strides = [1, 1]} : vector<32x32xf32> to vector<32x8xf32>
    %69 = vector.shape_cast %68 : vector<32x8xf32> to vector<2x16x8xf32>
    %70 = vector.extract_strided_slice %20 {offsets = [0, 16, 0], sizes = [2, 8, 16], strides = [1, 1, 1]} : vector<2x32x16xf32> to vector<2x8x16xf32>
    "tpu.trace_start"() <{level = 10 : i32, message = "bqd,bdk->bqk"}> : () -> ()
    %cst_39 = arith.constant dense<0.000000e+00> : vector<2x8x16xf32>
    %71 = tpu.matmul %67, %70, %cst_39 {dimension_numbers = #tpu.dot_dimension_numbers<[2], [1], [1], [2], [0, 0, 0, 1, 1, 2], [0], [0]>} : vector<2x8x8xf32>, vector<2x8x16xf32>, vector<2x8x16xf32> -> vector<2x8x16xf32>
    "tpu.trace_stop"() : () -> ()
    %cst_40 = arith.constant dense<0xFF800000> : vector<2x8xf32>
    %72 = vector.multi_reduction <maximumf>, %71, %cst_40 [2] : vector<2x8x16xf32> to vector<2x8xf32>
    %73 = vector.shape_cast %72 : vector<2x8xf32> to vector<2x8x1xf32>
    %74 = vector.broadcast %73 : vector<2x8x1xf32> to vector<2x8x16xf32>
    %75 = arith.subf %71, %74 : vector<2x8x16xf32>
    %76 = math.exp %75 : vector<2x8x16xf32>
    %cst_41 = arith.constant dense<0.000000e+00> : vector<2x8xf32>
    %77 = vector.multi_reduction <add>, %76, %cst_41 [2] : vector<2x8x16xf32> to vector<2x8xf32>
    %78 = vector.shape_cast %77 : vector<2x8xf32> to vector<2x8x1xf32>
    "tpu.trace_start"() <{level = 10 : i32, message = "bqk,bkd->bqd"}> : () -> ()
    %cst_42 = arith.constant dense<0.000000e+00> : vector<2x8x8xf32>
    %79 = tpu.matmul %76, %69, %cst_42 {dimension_numbers = #tpu.dot_dimension_numbers<[2], [1], [1], [2], [0, 0, 0, 1, 1, 2], [0], [0]>} : vector<2x8x16xf32>, vector<2x16x8xf32>, vector<2x8x8xf32> -> vector<2x8x8xf32>
    "tpu.trace_stop"() : () -> ()
    %80 = tpu.reciprocal %78 {approx = true} : vector<2x8x1xf32> -> vector<2x8x1xf32>
    %81 = vector.broadcast %80 : vector<2x8x1xf32> to vector<2x8x8xf32>
    %82 = arith.mulf %79, %81 : vector<2x8x8xf32>
    %83 = vector.shape_cast %82 : vector<2x8x8xf32> to vector<16x8xf32>
    %c2 = arith.constant 2 : index
    %c0_43 = arith.constant 0 : index
    %c0_44 = arith.constant 0 : index
    %84 = vector.load %arg7[%c2, %c0_43, %c0_44] : memref<4x8x32xf32, #tpu.memory_space<vmem>>, vector<1x8x32xf32>
    %85 = vector.shape_cast %84 : vector<1x8x32xf32> to vector<8x32xf32>
    %cst_45 = arith.constant dense<0.000000e+00> : vector<16x32xf32>
    %86 = tpu.matmul %83, %85, %cst_45 {dimension_numbers = #tpu.dot_dimension_numbers<[1], [0], [0], [1], [0, 0, 1, 1], [], []>} : vector<16x8xf32>, vector<8x32xf32>, vector<16x32xf32> -> vector<16x32xf32>
    %87 = arith.addf %65, %86 : vector<16x32xf32>
    %88 = vector.extract_strided_slice %9 {offsets = [0, 24], sizes = [16, 8], strides = [1, 1]} : vector<16x32xf32> to vector<16x8xf32>
    %89 = vector.shape_cast %88 : vector<16x8xf32> to vector<2x8x8xf32>
    %90 = vector.extract_strided_slice %14 {offsets = [0, 24], sizes = [32, 8], strides = [1, 1]} : vector<32x32xf32> to vector<32x8xf32>
    %91 = vector.shape_cast %90 : vector<32x8xf32> to vector<2x16x8xf32>
    %92 = vector.extract_strided_slice %20 {offsets = [0, 24, 0], sizes = [2, 8, 16], strides = [1, 1, 1]} : vector<2x32x16xf32> to vector<2x8x16xf32>
    "tpu.trace_start"() <{level = 10 : i32, message = "bqd,bdk->bqk"}> : () -> ()
    %cst_46 = arith.constant dense<0.000000e+00> : vector<2x8x16xf32>
    %93 = tpu.matmul %89, %92, %cst_46 {dimension_numbers = #tpu.dot_dimension_numbers<[2], [1], [1], [2], [0, 0, 0, 1, 1, 2], [0], [0]>} : vector<2x8x8xf32>, vector<2x8x16xf32>, vector<2x8x16xf32> -> vector<2x8x16xf32>
    "tpu.trace_stop"() : () -> ()
    %cst_47 = arith.constant dense<0xFF800000> : vector<2x8xf32>
    %94 = vector.multi_reduction <maximumf>, %93, %cst_47 [2] : vector<2x8x16xf32> to vector<2x8xf32>
    %95 = vector.shape_cast %94 : vector<2x8xf32> to vector<2x8x1xf32>
    %96 = vector.broadcast %95 : vector<2x8x1xf32> to vector<2x8x16xf32>
    %97 = arith.subf %93, %96 : vector<2x8x16xf32>
    %98 = math.exp %97 : vector<2x8x16xf32>
    %cst_48 = arith.constant dense<0.000000e+00> : vector<2x8xf32>
    %99 = vector.multi_reduction <add>, %98, %cst_48 [2] : vector<2x8x16xf32> to vector<2x8xf32>
    %100 = vector.shape_cast %99 : vector<2x8xf32> to vector<2x8x1xf32>
    "tpu.trace_start"() <{level = 10 : i32, message = "bqk,bkd->bqd"}> : () -> ()
    %cst_49 = arith.constant dense<0.000000e+00> : vector<2x8x8xf32>
    %101 = tpu.matmul %98, %91, %cst_49 {dimension_numbers = #tpu.dot_dimension_numbers<[2], [1], [1], [2], [0, 0, 0, 1, 1, 2], [0], [0]>} : vector<2x8x16xf32>, vector<2x16x8xf32>, vector<2x8x8xf32> -> vector<2x8x8xf32>
    "tpu.trace_stop"() : () -> ()
    %102 = tpu.reciprocal %100 {approx = true} : vector<2x8x1xf32> -> vector<2x8x1xf32>
    %103 = vector.broadcast %102 : vector<2x8x1xf32> to vector<2x8x8xf32>
    %104 = arith.mulf %101, %103 : vector<2x8x8xf32>
    %105 = vector.shape_cast %104 : vector<2x8x8xf32> to vector<16x8xf32>
    %c3 = arith.constant 3 : index
    %c0_50 = arith.constant 0 : index
    %c0_51 = arith.constant 0 : index
    %106 = vector.load %arg7[%c3, %c0_50, %c0_51] : memref<4x8x32xf32, #tpu.memory_space<vmem>>, vector<1x8x32xf32>
    %107 = vector.shape_cast %106 : vector<1x8x32xf32> to vector<8x32xf32>
    %cst_52 = arith.constant dense<0.000000e+00> : vector<16x32xf32>
    %108 = tpu.matmul %105, %107, %cst_52 {dimension_numbers = #tpu.dot_dimension_numbers<[1], [0], [0], [1], [0, 0, 1, 1], [], []>} : vector<16x8xf32>, vector<8x32xf32>, vector<16x32xf32> -> vector<16x32xf32>
    %109 = arith.addf %87, %108 : vector<16x32xf32>
    %110 = arith.addf %1, %109 : vector<16x32xf32>
    %c0_53 = arith.constant 0 : index
    %c0_54 = arith.constant 0 : index
    %111 = vector.load %arg11[%c0_53, %c0_54] : memref<1x32xf32, #tpu.memory_space<vmem>>, vector<1x32xf32>
    %112 = vector.broadcast %111 : vector<1x32xf32> to vector<16x32xf32>
    %113 = arith.addf %110, %112 : vector<16x32xf32>
    %cst_55 = arith.constant dense<0.000000e+00> : vector<16xf32>
    %114 = vector.multi_reduction <add>, %113, %cst_55 [1] : vector<16x32xf32> to vector<16xf32>
    %115 = vector.shape_cast %114 : vector<16xf32> to vector<16x1xf32>
    %cst_56 = arith.constant 3.200000e+01 : f32
    %116 = vector.broadcast %cst_56 : f32 to vector<16x1xf32>
    %117 = arith.divf %115, %116 : vector<16x1xf32>
    %118 = vector.broadcast %117 : vector<16x1xf32> to vector<16x32xf32>
    %119 = arith.subf %113, %118 : vector<16x32xf32>
    %120 = arith.mulf %119, %119 : vector<16x32xf32>
    %cst_57 = arith.constant dense<0.000000e+00> : vector<16xf32>
    %121 = vector.multi_reduction <add>, %120, %cst_57 [1] : vector<16x32xf32> to vector<16xf32>
    %122 = vector.shape_cast %121 : vector<16xf32> to vector<16x1xf32>
    %cst_58 = arith.constant 3.200000e+01 : f32
    %123 = vector.broadcast %cst_58 : f32 to vector<16x1xf32>
    %124 = arith.divf %122, %123 : vector<16x1xf32>
    %125 = vector.broadcast %117 : vector<16x1xf32> to vector<16x32xf32>
    %126 = arith.subf %113, %125 : vector<16x32xf32>
    %cst_59 = arith.constant 9.99999974E-6 : f32
    %127 = vector.broadcast %cst_59 : f32 to vector<16x1xf32>
    %128 = arith.addf %124, %127 : vector<16x1xf32>
    %129 = math.rsqrt %128 : vector<16x1xf32>
    %130 = vector.broadcast %129 : vector<16x1xf32> to vector<16x32xf32>
    %131 = arith.mulf %126, %130 : vector<16x32xf32>
    %c0_60 = arith.constant 0 : index
    %c0_61 = arith.constant 0 : index
    %132 = vector.load %arg12[%c0_60, %c0_61] : memref<1x32xf32, #tpu.memory_space<vmem>>, vector<1x32xf32>
    %133 = vector.broadcast %132 : vector<1x32xf32> to vector<16x32xf32>
    %134 = arith.mulf %131, %133 : vector<16x32xf32>
    %c0_62 = arith.constant 0 : index
    %c0_63 = arith.constant 0 : index
    %135 = vector.load %arg13[%c0_62, %c0_63] : memref<1x32xf32, #tpu.memory_space<vmem>>, vector<1x32xf32>
    %136 = vector.broadcast %135 : vector<1x32xf32> to vector<16x32xf32>
    %137 = arith.addf %134, %136 : vector<16x32xf32>
    %138 = vector.shape_cast %137 : vector<16x32xf32> to vector<2x8x32xf32>
    %c0_64 = arith.constant 0 : index
    %c0_65 = arith.constant 0 : index
    %c0_66 = arith.constant 0 : index
    %139 = vector.load %arg14[%c0_64, %c0_65, %c0_66] : memref<2x8x32xf32, #tpu.memory_space<vmem>>, vector<2x8x32xf32>
    tpu.vector_store %arg14[%c0_64, %c0_65, %c0_66], %138 {strides = array<i32>} : memref<2x8x32xf32, #tpu.memory_space<vmem>>, vector<2x8x32xf32>,
    return
  }
  func.func @transform_0(%arg0: i32) -> (i32, i32, i32) {
    %c0_i32 = arith.constant 0 : i32
    %c0_i32_0 = arith.constant 0 : i32
    %c0_i32_1 = arith.constant 0 : i32
    return %arg0, %c0_i32, %c0_i32_0 : i32, i32, i32
  }
  func.func @transform_1(%arg0: i32) -> (i32, i32, i32) {
    %c0_i32 = arith.constant 0 : i32
    %c0_i32_0 = arith.constant 0 : i32
    %c0_i32_1 = arith.constant 0 : i32
    return %arg0, %c0_i32, %c0_i32_0 : i32, i32, i32
  }
  func.func @transform_2(%arg0: i32) -> (i32, i32, i32) {
    %c0_i32 = arith.constant 0 : i32
    %c0_i32_0 = arith.constant 0 : i32
    %c0_i32_1 = arith.constant 0 : i32
    return %arg0, %c0_i32, %c0_i32_0 : i32, i32, i32
  }
  func.func @transform_3(%arg0: i32) -> (i32, i32) {
    %c0_i32 = arith.constant 0 : i32
    %c0_i32_0 = arith.constant 0 : i32
    %c0_i32_1 = arith.constant 0 : i32
    return %c0_i32, %c0_i32_0 : i32, i32
  }
  func.func @transform_4(%arg0: i32) -> (i32, i32, i32) {
    %c0_i32 = arith.constant 0 : i32
    %c0_i32_0 = arith.constant 0 : i32
    %c0_i32_1 = arith.constant 0 : i32
    %c0_i32_2 = arith.constant 0 : i32
    return %c0_i32, %c0_i32_0, %c0_i32_1 : i32, i32, i32
  }
  func.func @transform_5(%arg0: i32) -> (i32, i32) {
    %c0_i32 = arith.constant 0 : i32
    %c0_i32_0 = arith.constant 0 : i32
    %c0_i32_1 = arith.constant 0 : i32
    return %c0_i32, %c0_i32_0 : i32, i32
  }
  func.func @transform_6(%arg0: i32) -> (i32, i32, i32) {
    %c0_i32 = arith.constant 0 : i32
    %c0_i32_0 = arith.constant 0 : i32
    %c0_i32_1 = arith.constant 0 : i32
    %c0_i32_2 = arith.constant 0 : i32
    return %c0_i32, %c0_i32_0, %c0_i32_1 : i32, i32, i32
  }
  func.func @transform_7(%arg0: i32) -> (i32, i32) {
    %c0_i32 = arith.constant 0 : i32
    %c0_i32_0 = arith.constant 0 : i32
    %c0_i32_1 = arith.constant 0 : i32
    return %c0_i32, %c0_i32_0 : i32, i32
  }
  func.func @transform_8(%arg0: i32) -> (i32, i32) {
    %c0_i32 = arith.constant 0 : i32
    %c0_i32_0 = arith.constant 0 : i32
    %c0_i32_1 = arith.constant 0 : i32
    return %c0_i32, %c0_i32_0 : i32, i32
  }
  func.func @transform_9(%arg0: i32) -> (i32, i32) {
    %c0_i32 = arith.constant 0 : i32
    %c0_i32_0 = arith.constant 0 : i32
    %c0_i32_1 = arith.constant 0 : i32
    return %c0_i32, %c0_i32_0 : i32, i32
  }
  func.func @transform_10(%arg0: i32) -> (i32, i32) {
    %c0_i32 = arith.constant 0 : i32
    %c0_i32_0 = arith.constant 0 : i32
    %c0_i32_1 = arith.constant 0 : i32
    return %c0_i32, %c0_i32_0 : i32, i32
  }
  func.func @transform_11(%arg0: i32) -> (i32, i32) {
    %c0_i32 = arith.constant 0 : i32
    %c0_i32_0 = arith.constant 0 : i32
    %c0_i32_1 = arith.constant 0 : i32
    return %c0_i32, %c0_i32_0 : i32, i32
  }
  func.func @transform_12(%arg0: i32) -> (i32, i32) {
    %c0_i32 = arith.constant 0 : i32
    %c0_i32_0 = arith.constant 0 : i32
    %c0_i32_1 = arith.constant 0 : i32
    return %c0_i32, %c0_i32_0 : i32, i32
  }
  func.func @transform_13(%arg0: i32) -> (i32, i32, i32) {
    %c0_i32 = arith.constant 0 : i32
    %c0_i32_0 = arith.constant 0 : i32
    %c0_i32_1 = arith.constant 0 : i32
    return %arg0, %c0_i32, %c0_i32_0 : i32, i32, i32
  }
}

</mosaic_0001>

<llo_original>
// kernel: tpu_custom_call.1
$region0: #{tpu_custom_call.1}
  #allocation0 [shape = 'u32[]', space=smem, size = 0x4, offset = 0x4, fixed_abs, tag = 'smem constant byte address 0x4 - core index']
  #allocation1 [shape = 'u32[144,128]{1,0:T(1,128)}', space=vmem, size = 0x12000, scoped, tag = 'internal scratch']
  %s0 = inlined_call_operand.hbm [shape: f32[2,8,32], index: 0, kind: input, shape index: {}]
  %s1 = inlined_call_operand.vmem [shape: f32[2,16,32], index: 1, kind: input, shape index: {}]
  %s2 = inlined_call_operand.vmem [shape: f32[2,32,16], index: 2, kind: input, shape index: {}]
  %s3 = inlined_call_operand.hbm [shape: f32[32,32], index: 3, kind: input, shape index: {}]
  %s4 = inlined_call_operand.vmem [shape: f32[2,32,32], index: 4, kind: input, shape index: {}]
  %s5 = inlined_call_operand.hbm [shape: f32[32,32], index: 5, kind: input, shape index: {}]
  %s6 = inlined_call_operand.hbm [shape: f32[4,8,32], index: 6, kind: input, shape index: {}]
  %s7 = inlined_call_operand.vmem [shape: f32[1,32], index: 7, kind: input, shape index: {}]
  %s8 = inlined_call_operand.vmem [shape: f32[32,1], index: 8, kind: input, shape index: {}]
  %s9 = inlined_call_operand.vmem [shape: f32[1,32], index: 9, kind: input, shape index: {}]
  %s10 = inlined_call_operand.vmem [shape: f32[1,32], index: 10, kind: input, shape index: {}]
  %s11 = inlined_call_operand.vmem [shape: f32[1,32], index: 11, kind: input, shape index: {}]
  %s12 = inlined_call_operand.vmem [shape: f32[1,32], index: 12, kind: input, shape index: {}]
  %s13 = inlined_call_operand.hbm [shape: f32[2,8,32], index: 13, kind: output, shape index: {}]
  %s14 = sld [smem:[#allocation0]]
  $region78: #{tpu_custom_call.1} parent=0
    _
  %s16 = ssub.s32 1, %s14
  %s17 = scalar_select 0, %s16, %s14
  $region1: #{tpu_custom_call.1} parent=0
    #allocation2 [shape = 'u8[8192]{0}', space=vmem, size = 0x2000, scoped, tag = 'input window, operand 0, single buffered']
    #allocation3 [shape = 's32[1]{0}', space=sflag, size = 0x4, scoped, tag = 'scoped memory for tpu_custom_call.1']
    #allocation4 [shape = 's32[1]{0}', space=sflag, size = 0x4, scoped, tag = 'scoped memory for tpu_custom_call.1']
    #allocation5 [shape = 'u8[16384]{0}', space=vmem, size = 0x4000, scoped, tag = 'input window, operand 3, single buffered']
    #allocation6 [shape = 's32[1]{0}', space=sflag, size = 0x4, scoped, tag = 'scoped memory for tpu_custom_call.1']
    #allocation7 [shape = 'u8[16384]{0}', space=vmem, size = 0x4000, scoped, tag = 'input window, operand 5, single buffered']
    #allocation8 [shape = 'u8[16384]{0}', space=vmem, size = 0x4000, scoped, tag = 'input window, operand 6, single buffered']
    #allocation9 [shape = 's32[1]{0}', space=sflag, size = 0x4, scoped, tag = 'scoped memory for tpu_custom_call.1']
    #allocation10 [shape = 'u8[8192]{0}', space=vmem, size = 0x2000, scoped, tag = 'output window, operand 0, single buffered']
    %18 = vsyncpa [#allocation3], 0
    %19 = vsyncpa [#allocation6], 0
    %20 = vsyncpa [#allocation9], 0
    %21 = vsyncpa [#allocation4], 0
    // Predicated region
    $region2: #{tpu_custom_call.1} parent=1 // pred_check
      _
    $region3: #{tpu_custom_call.1} parent=1 // pred_check_branch
      %23 = sbr.rel (0) target = $region5
    $region4: #{tpu_custom_call.1} parent=1 // pred_region
      %s25 = ssub.s32 256, 256
      %26 = vsyncadd [#allocation3], %s25
      %s27 = sshll.u32 [#allocation2], 4
      %s28 = int_to_ptr.vmem [resolvable:$true] %s27
      %33 = dma.hbm_to_vmem [thread:$0]  %s0, 256, %s28, [#allocation3], 128, 128, 8
    $region5: #{tpu_custom_call.1} parent=1 // pred_fallthru
      _
    // Predicated region
    $region6: #{tpu_custom_call.1} parent=1 // pred_check
      _
    $region7: #{tpu_custom_call.1} parent=1 // pred_check_branch
      %35 = sbr.rel (0) target = $region9
    $region8: #{tpu_custom_call.1} parent=1 // pred_region
      _
    $region9: #{tpu_custom_call.1} parent=1 // pred_fallthru
      _
    // Predicated region
    $region10: #{tpu_custom_call.1} parent=1 // pred_check
      _
    $region11: #{tpu_custom_call.1} parent=1 // pred_check_branch
      %37 = sbr.rel (0) target = $region13
    $region12: #{tpu_custom_call.1} parent=1 // pred_region
      _
    $region13: #{tpu_custom_call.1} parent=1 // pred_fallthru
      _
    // Predicated region
    $region14: #{tpu_custom_call.1} parent=1 // pred_check
      _
    $region15: #{tpu_custom_call.1} parent=1 // pred_check_branch
      %39 = sbr.rel (0) target = $region17
    $region16: #{tpu_custom_call.1} parent=1 // pred_region
      %s41 = ssub.s32 512, 512
      %42 = vsyncadd [#allocation6], %s41
      %s43 = sshll.u32 [#allocation5], 4
      %s44 = int_to_ptr.vmem [resolvable:$true] %s43
      %49 = dma.hbm_to_vmem [thread:$0]  %s3, 512, %s44, [#allocation6], 128, 128, 8
    $region17: #{tpu_custom_call.1} parent=1 // pred_fallthru
      _
    // Predicated region
    $region18: #{tpu_custom_call.1} parent=1 // pred_check
      _
    $region19: #{tpu_custom_call.1} parent=1 // pred_check_branch
      %51 = sbr.rel (0) target = $region21
    $region20: #{tpu_custom_call.1} parent=1 // pred_region
      _
    $region21: #{tpu_custom_call.1} parent=1 // pred_fallthru
      _
    // Predicated region
    $region22: #{tpu_custom_call.1} parent=1 // pred_check
      _
    $region23: #{tpu_custom_call.1} parent=1 // pred_check_branch
      %53 = sbr.rel (0) target = $region25
    $region24: #{tpu_custom_call.1} parent=1 // pred_region
      %s55 = ssub.s32 512, 512
      %56 = vsyncadd [#allocation6], %s55
      %s57 = sshll.u32 [#allocation7], 4
      %s58 = int_to_ptr.vmem [resolvable:$true] %s57
      %63 = dma.hbm_to_vmem [thread:$0]  %s5, 512, %s58, [#allocation6], 128, 128, 8
    $region25: #{tpu_custom_call.1} parent=1 // pred_fallthru
      _
    // Predicated region
    $region26: #{tpu_custom_call.1} parent=1 // pred_check
      _
    $region27: #{tpu_custom_call.1} parent=1 // pred_check_branch
      %65 = sbr.rel (0) target = $region29
    $region28: #{tpu_custom_call.1} parent=1 // pred_region
      %s67 = ssub.s32 512, 512
      %68 = vsyncadd [#allocation9], %s67
      %s69 = sshll.u32 [#allocation8], 4
      %s70 = int_to_ptr.vmem [resolvable:$true] %s69
      %75 = dma.hbm_to_vmem [thread:$0]  %s6, 512, %s70, [#allocation9], 128, 128, 8
    $region29: #{tpu_custom_call.1} parent=1 // pred_fallthru
      _
    // Predicated region
    $region30: #{tpu_custom_call.1} parent=1 // pred_check
      _
    $region31: #{tpu_custom_call.1} parent=1 // pred_check_branch
      %77 = sbr.rel (0) target = $region33
    $region32: #{tpu_custom_call.1} parent=1 // pred_region
      _
    $region33: #{tpu_custom_call.1} parent=1 // pred_fallthru
      _
    // Predicated region
    $region34: #{tpu_custom_call.1} parent=1 // pred_check
      _
    $region35: #{tpu_custom_call.1} parent=1 // pred_check_branch
      %79 = sbr.rel (0) target = $region37
    $region36: #{tpu_custom_call.1} parent=1 // pred_region
      _
    $region37: #{tpu_custom_call.1} parent=1 // pred_fallthru
      _
    // Predicated region
    $region38: #{tpu_custom_call.1} parent=1 // pred_check
      _
    $region39: #{tpu_custom_call.1} parent=1 // pred_check_branch
      %81 = sbr.rel (0) target = $region41
    $region40: #{tpu_custom_call.1} parent=1 // pred_region
      _
    $region41: #{tpu_custom_call.1} parent=1 // pred_fallthru
      _
    // Predicated region
    $region42: #{tpu_custom_call.1} parent=1 // pred_check
      _
    $region43: #{tpu_custom_call.1} parent=1 // pred_check_branch
      %83 = sbr.rel (0) target = $region45
    $region44: #{tpu_custom_call.1} parent=1 // pred_region
      _
    $region45: #{tpu_custom_call.1} parent=1 // pred_fallthru
      _
    // Predicated region
    $region46: #{tpu_custom_call.1} parent=1 // pred_check
      _
    $region47: #{tpu_custom_call.1} parent=1 // pred_check_branch
      %85 = sbr.rel (0) target = $region49
    $region48: #{tpu_custom_call.1} parent=1 // pred_region
      _
    $region49: #{tpu_custom_call.1} parent=1 // pred_fallthru
      _
    // Predicated region
    $region50: #{tpu_custom_call.1} parent=1 // pred_check
      _
    $region51: #{tpu_custom_call.1} parent=1 // pred_check_branch
      %87 = sbr.rel (0) target = $region53
    $region52: #{tpu_custom_call.1} parent=1 // pred_region
      _
    $region53: #{tpu_custom_call.1} parent=1 // pred_fallthru
      _
    // Predicated region
    $region54: #{tpu_custom_call.1} parent=1 // pred_check
      _
    $region55: #{tpu_custom_call.1} parent=1 // pred_check_branch
      %89 = sbr.rel (0) target = $region57
    $region56: #{tpu_custom_call.1} parent=1 // pred_region
      %90 = dma.done [#allocation3], 256
    $region57: #{tpu_custom_call.1} parent=1 // pred_fallthru
      _
    // Predicated region
    $region58: #{tpu_custom_call.1} parent=1 // pred_check
      _
    $region59: #{tpu_custom_call.1} parent=1 // pred_check_branch
      %92 = sbr.rel (0) target = $region61
    $region60: #{tpu_custom_call.1} parent=1 // pred_region
      %93 = dma.done [#allocation6], 512
    $region61: #{tpu_custom_call.1} parent=1 // pred_fallthru
      _
    // Predicated region
    $region62: #{tpu_custom_call.1} parent=1 // pred_check
      _
    $region63: #{tpu_custom_call.1} parent=1 // pred_check_branch
      %95 = sbr.rel (0) target = $region65
    $region64: #{tpu_custom_call.1} parent=1 // pred_region
      %96 = dma.done [#allocation6], 512
    $region65: #{tpu_custom_call.1} parent=1 // pred_fallthru
      _
    // Predicated region
    $region66: #{tpu_custom_call.1} parent=1 // pred_check
      _
    $region67: #{tpu_custom_call.1} parent=1 // pred_check_branch
      %98 = sbr.rel (0) target = $region69
    $region68: #{tpu_custom_call.1} parent=1 // pred_region
      %99 = dma.done [#allocation9], 512
    $region69: #{tpu_custom_call.1} parent=1 // pred_fallthru
      _
    %v100 = vld [vmem:[#allocation2] sm:$0xff]
    %v101 = vld [vmem:[#allocation2 + $0x8] sm:$0xff]
    %v102 = vld [vmem:[%s1] sm:$0xff]
    %v103 = vld [vmem:[%s1 + $0x8] sm:$0xff]
    %v104 = vld [vmem:[%s1 + $0x10] sm:$0xff]
    %v105 = vld [vmem:[%s1 + $0x18] sm:$0xff]
    %v106 = vld [vmem:[%s2] sm:$0xff]
    %v107 = vld [vmem:[%s2 + $0x8] sm:$0xff]
    %v108 = vld [vmem:[%s2 + $0x10] sm:$0xff]
    %v109 = vld [vmem:[%s2 + $0x18] sm:$0xff]
    %v110 = vld [vmem:[%s2 + $0x20] sm:$0xff]
    %v111 = vld [vmem:[%s2 + $0x28] sm:$0xff]
    %v112 = vld [vmem:[%s2 + $0x30] sm:$0xff]
    %v113 = vld [vmem:[%s2 + $0x38] sm:$0xff]
    %v114 = vld [vmem:[#allocation5] sm:$0xff]
    %v115 = vld [vmem:[#allocation5 + $0x8] sm:$0xff]
    %v116 = vld [vmem:[#allocation5 + $0x10] sm:$0xff]
    %v117 = vld [vmem:[#allocation5 + $0x18] sm:$0xff]
    %v118 = vld [vmem:[%s7] sm:$0x1]
    %v120 = vlaneseq
    %v121 = vshrl.u32 %v120, 7
    %v122 = vsub.s32 0, %v121
    %v123 = vrot.slane %v118, %v122
    %vm125 = vcmask 261120
    %v127 = vsel %vm125, %v100, 0
    %v130 = vsel %vm125, %v101, 0
    %132 = vmatprep.subr.mxu0 0.0
    %133 = vmatpush1.msra.mxu0 %v114
    %134 = vmatprep.subr.mxu0 0.0
    %135 = vmatpush1.msra.mxu0 %v115
    %136 = vmatprep.subr.mxu0 0.0
    %137 = vmatpush1.msra.mxu0 %v116
    %138 = vmatprep.subr.mxu0 0.0
    %139 = vmatpush1.msra.mxu0 %v117
    %140 = vmatprep.subr.mxu0 0.0
    %141 = vmatpush1.msra.mxu0 0.0
    %142 = vmatprep.subr.mxu0 0.0
    %143 = vmatpush1.msra.mxu0 0.0
    %144 = vmatprep.subr.mxu0 0.0
    %145 = vmatpush1.msra.mxu0 0.0
    %146 = vmatprep.subr.mxu0 0.0
    %147 = vmatpush1.msra.mxu0 0.0
    %148 = vmatprep.subr.mxu0 0.0
    %149 = vmatpush1.msra.mxu0 0.0
    %150 = vmatprep.subr.mxu0 0.0
    %151 = vmatpush1.msra.mxu0 0.0
    %152 = vmatprep.subr.mxu0 0.0
    %153 = vmatpush1.msra.mxu0 0.0
    %154 = vmatprep.subr.mxu0 0.0
    %155 = vmatpush1.msra.mxu0 0.0
    %156 = vmatprep.subr.mxu0 0.0
    %157 = vmatpush1.msra.mxu0 0.0
    %158 = vmatprep.subr.mxu0 0.0
    %159 = vmatpush1.msra.mxu0 0.0
    %160 = vmatprep.subr.mxu0 0.0
    %161 = vmatpush1.msra.mxu0 0.0
    %162 = vmatprep.subr.mxu0 0.0
    %163 = vmatpush1.msra.mxu0 0.0
    %164 = vmatprep.subr.mxu0 0.0
    %165 = vmatpush1.msra.mxu0 0.0
    %166 = vmatprep.subr.mxu0 0.0
    %167 = vmatpush1.msra.mxu0 0.0
    %168 = vmatprep.subr.mxu0 0.0
    %169 = vmatpush1.msra.mxu0 0.0
    %170 = vmatprep.subr.mxu0 0.0
    %171 = vmatpush1.msra.mxu0 0.0
    %172 = vmatprep.subr.mxu0 0.0
    %173 = vmatpush1.msra.mxu0 0.0
    %174 = vmatprep.subr.mxu0 0.0
    %175 = vmatpush1.msra.mxu0 0.0
    %176 = vmatprep.subr.mxu0 0.0
    %177 = vmatpush1.msra.mxu0 0.0
    %178 = vmatprep.subr.mxu0 0.0
    %179 = vmatpush1.msra.mxu0 0.0
    %180 = vmatprep.subr.mxu0 0.0
    %181 = vmatpush1.msra.mxu0 0.0
    %182 = vmatprep.subr.mxu0 0.0
    %183 = vmatpush1.msra.mxu0 0.0
    %184 = vmatprep.subr.mxu0 0.0
    %185 = vmatpush1.msra.mxu0 0.0
    %186 = vmatprep.subr.mxu0 0.0
    %187 = vmatpush1.msra.mxu0 0.0
    %188 = vmatprep.subr.mxu0 0.0
    %189 = vmatpush1.msra.mxu0 0.0
    %190 = vmatprep.subr.mxu0 0.0
    %191 = vmatpush1.msra.mxu0 0.0
    %192 = vmatprep.subr.mxu0 0.0
    %193 = vmatpush1.msra.mxu0 0.0
    %194 = vmatprep.subr.mxu0 0.0
    %195 = vmatpush1.msra.mxu0 0.0
    %196 = vmatprep.mubr.f32.mxu0 0.0
    %197 = vmatmul.mubr.f32.gmra.mrb[0].mxu0 %v127
    %v198 = vpop.f32.mrb[0].mxu0
    %v199 = vadd.f32 %v123, %v198
    %v200 = vpop.f32.mrb[0].mxu0
    %201 = vmatprep.mubr.f32.mxu0 0.0
    %202 = vmatmul.mubr.f32.gmra.mrb[0].mxu0 %v130
    %v203 = vpop.f32.mrb[0].mxu0
    %v204 = vadd.f32 %v123, %v203
    %v205 = vpop.f32.mrb[0].mxu0
    %206 = vdwg.mxu0
    %v207 = vld [vmem:[#allocation7] sm:$0xff]
    %v208 = vld [vmem:[#allocation7 + $0x8] sm:$0xff]
    %v209 = vld [vmem:[#allocation7 + $0x10] sm:$0xff]
    %v210 = vld [vmem:[#allocation7 + $0x18] sm:$0xff]
    %v211 = vld [vmem:[%s9] sm:$0x1]
    %v213 = vlaneseq
    %v214 = vshrl.u32 %v213, 7
    %v215 = vsub.s32 0, %v214
    %v216 = vrot.slane %v211, %v215
    %v219 = vsel %vm125, %v102, 0
    %v222 = vsel %vm125, %v103, 0
    %v225 = vsel %vm125, %v104, 0
    %v228 = vsel %vm125, %v105, 0
    %230 = vmatprep.subr.mxu0 0.0
    %231 = vmatpush1.msra.mxu0 %v207
    %232 = vmatprep.subr.mxu0 0.0
    %233 = vmatpush1.msra.mxu0 %v208
    %234 = vmatprep.subr.mxu0 0.0
    %235 = vmatpush1.msra.mxu0 %v209
    %236 = vmatprep.subr.mxu0 0.0
    %237 = vmatpush1.msra.mxu0 %v210
    %238 = vmatprep.subr.mxu0 0.0
    %239 = vmatpush1.msra.mxu0 0.0
    %240 = vmatprep.subr.mxu0 0.0
    %241 = vmatpush1.msra.mxu0 0.0
    %242 = vmatprep.subr.mxu0 0.0
    %243 = vmatpush1.msra.mxu0 0.0
    %244 = vmatprep.subr.mxu0 0.0
    %245 = vmatpush1.msra.mxu0 0.0
    %246 = vmatprep.subr.mxu0 0.0
    %247 = vmatpush1.msra.mxu0 0.0
    %248 = vmatprep.subr.mxu0 0.0
    %249 = vmatpush1.msra.mxu0 0.0
    %250 = vmatprep.subr.mxu0 0.0
    %251 = vmatpush1.msra.mxu0 0.0
    %252 = vmatprep.subr.mxu0 0.0
    %253 = vmatpush1.msra.mxu0 0.0
    %254 = vmatprep.subr.mxu0 0.0
    %255 = vmatpush1.msra.mxu0 0.0
    %256 = vmatprep.subr.mxu0 0.0
    %257 = vmatpush1.msra.mxu0 0.0
    %258 = vmatprep.subr.mxu0 0.0
    %259 = vmatpush1.msra.mxu0 0.0
    %260 = vmatprep.subr.mxu0 0.0
    %261 = vmatpush1.msra.mxu0 0.0
    %262 = vmatprep.subr.mxu0 0.0
    %263 = vmatpush1.msra.mxu0 0.0
    %264 = vmatprep.subr.mxu0 0.0
    %265 = vmatpush1.msra.mxu0 0.0
    %266 = vmatprep.subr.mxu0 0.0
    %267 = vmatpush1.msra.mxu0 0.0
    %268 = vmatprep.subr.mxu0 0.0
    %269 = vmatpush1.msra.mxu0 0.0
    %270 = vmatprep.subr.mxu0 0.0
    %271 = vmatpush1.msra.mxu0 0.0
    %272 = vmatprep.subr.mxu0 0.0
    %273 = vmatpush1.msra.mxu0 0.0
    %274 = vmatprep.subr.mxu0 0.0
    %275 = vmatpush1.msra.mxu0 0.0
    %276 = vmatprep.subr.mxu0 0.0
    %277 = vmatpush1.msra.mxu0 0.0
    %278 = vmatprep.subr.mxu0 0.0
    %279 = vmatpush1.msra.mxu0 0.0
    %280 = vmatprep.subr.mxu0 0.0
    %281 = vmatpush1.msra.mxu0 0.0
    %282 = vmatprep.subr.mxu0 0.0
    %283 = vmatpush1.msra.mxu0 0.0
    %284 = vmatprep.subr.mxu0 0.0
    %285 = vmatpush1.msra.mxu0 0.0
    %286 = vmatprep.subr.mxu0 0.0
    %287 = vmatpush1.msra.mxu0 0.0
    %288 = vmatprep.subr.mxu0 0.0
    %289 = vmatpush1.msra.mxu0 0.0
    %290 = vmatprep.subr.mxu0 0.0
    %291 = vmatpush1.msra.mxu0 0.0
    %292 = vmatprep.subr.mxu0 0.0
    %293 = vmatpush1.msra.mxu0 0.0
    %294 = vmatprep.mubr.f32.mxu0 0.0
    %295 = vmatmul.mubr.f32.gmra.mrb[0].mxu0 %v219
    %v296 = vpop.f32.mrb[0].mxu0
    %v297 = vadd.f32 %v216, %v296
    %v298 = vpop.f32.mrb[0].mxu0
    %299 = vmatprep.mubr.f32.mxu0 0.0
    %300 = vmatmul.mubr.f32.gmra.mrb[0].mxu0 %v222
    %v301 = vpop.f32.mrb[0].mxu0
    %v302 = vadd.f32 %v216, %v301
    %v303 = vpop.f32.mrb[0].mxu0
    %304 = vmatprep.mubr.f32.mxu0 0.0
    %305 = vmatmul.mubr.f32.gmra.mrb[0].mxu0 %v225
    %v306 = vpop.f32.mrb[0].mxu0
    %v307 = vadd.f32 %v216, %v306
    %v308 = vpop.f32.mrb[0].mxu0
    %309 = vmatprep.mubr.f32.mxu0 0.0
    %310 = vmatmul.mubr.f32.gmra.mrb[0].mxu0 %v228
    %v311 = vpop.f32.mrb[0].mxu0
    %v312 = vadd.f32 %v216, %v311
    %v313 = vpop.f32.mrb[0].mxu0
    %314 = vdwg.mxu0
    %v315 = vld [vmem:[%s4] sm:$0xff]
    %v316 = vld [vmem:[%s4 + $0x8] sm:$0xff]
    %v317 = vld [vmem:[%s4 + $0x10] sm:$0xff]
    %v318 = vld [vmem:[%s4 + $0x18] sm:$0xff]
    %v319 = vld [vmem:[%s4 + $0x20] sm:$0xff]
    %v320 = vld [vmem:[%s4 + $0x28] sm:$0xff]
    %v321 = vld [vmem:[%s4 + $0x30] sm:$0xff]
    %v322 = vld [vmem:[%s4 + $0x38] sm:$0xff]
    %v323 = vld [vmem:[%s8] sm:$0xff]
    %v324 = vld [vmem:[%s8 + $0x8] sm:$0xff]
    %v325 = vld [vmem:[%s8 + $0x10] sm:$0xff]
    %v326 = vld [vmem:[%s8 + $0x18] sm:$0xff]
    %328 = vset.pattern.permute.xlu0 0
    %329 = vperm.xlu0 %328, %v323
    %v330 = vpop.permute.xlu0 %329
    %333 = vset.pattern.permute.xlu0 0
    %334 = vperm.xlu0 %333, %v324
    %v335 = vpop.permute.xlu0 %334
    %338 = vset.pattern.permute.xlu0 0
    %339 = vperm.xlu0 %338, %v325
    %v340 = vpop.permute.xlu0 %339
    %343 = vset.pattern.permute.xlu0 0
    %344 = vperm.xlu0 %343, %v326
    %v345 = vpop.permute.xlu0 %344
    %v348 = vsel %vm125, %v315, 0
    %v351 = vsel %vm125, %v316, 0
    %v354 = vsel %vm125, %v317, 0
    %v357 = vsel %vm125, %v318, 0
    %359 = vmatprep.subr.mxu0 0.0
    %360 = vmatpush1.msra.mxu0 %v106
    %361 = vmatprep.subr.mxu0 0.0
    %362 = vmatpush1.msra.mxu0 %v107
    %363 = vmatprep.subr.mxu0 0.0
    %364 = vmatpush1.msra.mxu0 %v108
    %365 = vmatprep.subr.mxu0 0.0
    %366 = vmatpush1.msra.mxu0 %v109
    %367 = vmatprep.subr.mxu0 0.0
    %368 = vmatpush1.msra.mxu0 0.0
    %369 = vmatprep.subr.mxu0 0.0
    %370 = vmatpush1.msra.mxu0 0.0
    %371 = vmatprep.subr.mxu0 0.0
    %372 = vmatpush1.msra.mxu0 0.0
    %373 = vmatprep.subr.mxu0 0.0
    %374 = vmatpush1.msra.mxu0 0.0
    %375 = vmatprep.subr.mxu0 0.0
    %376 = vmatpush1.msra.mxu0 0.0
    %377 = vmatprep.subr.mxu0 0.0
    %378 = vmatpush1.msra.mxu0 0.0
    %379 = vmatprep.subr.mxu0 0.0
    %380 = vmatpush1.msra.mxu0 0.0
    %381 = vmatprep.subr.mxu0 0.0
    %382 = vmatpush1.msra.mxu0 0.0
    %383 = vmatprep.subr.mxu0 0.0
    %384 = vmatpush1.msra.mxu0 0.0
    %385 = vmatprep.subr.mxu0 0.0
    %386 = vmatpush1.msra.mxu0 0.0
    %387 = vmatprep.subr.mxu0 0.0
    %388 = vmatpush1.msra.mxu0 0.0
    %389 = vmatprep.subr.mxu0 0.0
    %390 = vmatpush1.msra.mxu0 0.0
    %391 = vmatprep.subr.mxu0 0.0
    %392 = vmatpush1.msra.mxu0 0.0
    %393 = vmatprep.subr.mxu0 0.0
    %394 = vmatpush1.msra.mxu0 0.0
    %395 = vmatprep.subr.mxu0 0.0
    %396 = vmatpush1.msra.mxu0 0.0
    %397 = vmatprep.subr.mxu0 0.0
    %398 = vmatpush1.msra.mxu0 0.0
    %399 = vmatprep.subr.mxu0 0.0
    %400 = vmatpush1.msra.mxu0 0.0
    %401 = vmatprep.subr.mxu0 0.0
    %402 = vmatpush1.msra.mxu0 0.0
    %403 = vmatprep.subr.mxu0 0.0
    %404 = vmatpush1.msra.mxu0 0.0
    %405 = vmatprep.subr.mxu0 0.0
    %406 = vmatpush1.msra.mxu0 0.0
    %407 = vmatprep.subr.mxu0 0.0
    %408 = vmatpush1.msra.mxu0 0.0
    %409 = vmatprep.subr.mxu0 0.0
    %410 = vmatpush1.msra.mxu0 0.0
    %411 = vmatprep.subr.mxu0 0.0
    %412 = vmatpush1.msra.mxu0 0.0
    %413 = vmatprep.subr.mxu0 0.0
    %414 = vmatpush1.msra.mxu0 0.0
    %415 = vmatprep.subr.mxu0 0.0
    %416 = vmatpush1.msra.mxu0 0.0
    %417 = vmatprep.subr.mxu0 0.0
    %418 = vmatpush1.msra.mxu0 0.0
    %419 = vmatprep.subr.mxu0 0.0
    %420 = vmatpush1.msra.mxu0 0.0
    %421 = vmatprep.subr.mxu0 0.0
    %422 = vmatpush1.msra.mxu0 0.0
    %423 = vmatprep.mubr.f32.mxu0 0.0
    %424 = vmatmul.mubr.f32.gmra.mrb[0].mxu0 %v348
    %v425 = vpop.f32.mrb[0].mxu0
    %v426 = vadd.f32 %v330, %v425
    %v427 = vpop.f32.mrb[0].mxu0
    %428 = vmatprep.mubr.f32.mxu0 0.0
    %429 = vmatmul.mubr.f32.gmra.mrb[0].mxu0 %v351
    %v430 = vpop.f32.mrb[0].mxu0
    %v431 = vadd.f32 %v335, %v430
    %v432 = vpop.f32.mrb[0].mxu0
    %433 = vmatprep.mubr.f32.mxu0 0.0
    %434 = vmatmul.mubr.f32.gmra.mrb[0].mxu0 %v354
    %v435 = vpop.f32.mrb[0].mxu0
    %v436 = vadd.f32 %v340, %v435
    %v437 = vpop.f32.mrb[0].mxu0
    %438 = vmatprep.mubr.f32.mxu0 0.0
    %439 = vmatmul.mubr.f32.gmra.mrb[0].mxu0 %v357
    %v440 = vpop.f32.mrb[0].mxu0
    %v441 = vadd.f32 %v345, %v440
    %v442 = vpop.f32.mrb[0].mxu0
    %443 = vdwg.mxu0
    %v445 = vsel %vm125, %v319, 0
    %v448 = vsel %vm125, %v320, 0
    %v451 = vsel %vm125, %v321, 0
    %v454 = vsel %vm125, %v322, 0
    %456 = vmatprep.subr.mxu0 0.0
    %457 = vmatpush1.msra.mxu0 %v110
    %458 = vmatprep.subr.mxu0 0.0
    %459 = vmatpush1.msra.mxu0 %v111
    %460 = vmatprep.subr.mxu0 0.0
    %461 = vmatpush1.msra.mxu0 %v112
    %462 = vmatprep.subr.mxu0 0.0
    %463 = vmatpush1.msra.mxu0 %v113
    %464 = vmatprep.subr.mxu0 0.0
    %465 = vmatpush1.msra.mxu0 0.0
    %466 = vmatprep.subr.mxu0 0.0
    %467 = vmatpush1.msra.mxu0 0.0
    %468 = vmatprep.subr.mxu0 0.0
    %469 = vmatpush1.msra.mxu0 0.0
    %470 = vmatprep.subr.mxu0 0.0
    %471 = vmatpush1.msra.mxu0 0.0
    %472 = vmatprep.subr.mxu0 0.0
    %473 = vmatpush1.msra.mxu0 0.0
    %474 = vmatprep.subr.mxu0 0.0
    %475 = vmatpush1.msra.mxu0 0.0
    %476 = vmatprep.subr.mxu0 0.0
    %477 = vmatpush1.msra.mxu0 0.0
    %478 = vmatprep.subr.mxu0 0.0
    %479 = vmatpush1.msra.mxu0 0.0
    %480 = vmatprep.subr.mxu0 0.0
    %481 = vmatpush1.msra.mxu0 0.0
    %482 = vmatprep.subr.mxu0 0.0
    %483 = vmatpush1.msra.mxu0 0.0
    %484 = vmatprep.subr.mxu0 0.0
    %485 = vmatpush1.msra.mxu0 0.0
    %486 = vmatprep.subr.mxu0 0.0
    %487 = vmatpush1.msra.mxu0 0.0
    %488 = vmatprep.subr.mxu0 0.0
    %489 = vmatpush1.msra.mxu0 0.0
    %490 = vmatprep.subr.mxu0 0.0
    %491 = vmatpush1.msra.mxu0 0.0
    %492 = vmatprep.subr.mxu0 0.0
    %493 = vmatpush1.msra.mxu0 0.0
    %494 = vmatprep.subr.mxu0 0.0
    %495 = vmatpush1.msra.mxu0 0.0
    %496 = vmatprep.subr.mxu0 0.0
    %497 = vmatpush1.msra.mxu0 0.0
    %498 = vmatprep.subr.mxu0 0.0
    %499 = vmatpush1.msra.mxu0 0.0
    %500 = vmatprep.subr.mxu0 0.0
    %501 = vmatpush1.msra.mxu0 0.0
    %502 = vmatprep.subr.mxu0 0.0
    %503 = vmatpush1.msra.mxu0 0.0
    %504 = vmatprep.subr.mxu0 0.0
    %505 = vmatpush1.msra.mxu0 0.0
    %506 = vmatprep.subr.mxu0 0.0
    %507 = vmatpush1.msra.mxu0 0.0
    %508 = vmatprep.subr.mxu0 0.0
    %509 = vmatpush1.msra.mxu0 0.0
    %510 = vmatprep.subr.mxu0 0.0
    %511 = vmatpush1.msra.mxu0 0.0
    %512 = vmatprep.subr.mxu0 0.0
    %513 = vmatpush1.msra.mxu0 0.0
    %514 = vmatprep.subr.mxu0 0.0
    %515 = vmatpush1.msra.mxu0 0.0
    %516 = vmatprep.subr.mxu0 0.0
    %517 = vmatpush1.msra.mxu0 0.0
    %518 = vmatprep.subr.mxu0 0.0
    %519 = vmatpush1.msra.mxu0 0.0
    %520 = vmatprep.mubr.f32.mxu0 0.0
    %521 = vmatmul.mubr.f32.gmra.mrb[0].mxu0 %v445
    %v522 = vpop.f32.mrb[0].mxu0
    %v523 = vadd.f32 %v330, %v522
    %v524 = vpop.f32.mrb[0].mxu0
    %525 = vmatprep.mubr.f32.mxu0 0.0
    %526 = vmatmul.mubr.f32.gmra.mrb[0].mxu0 %v448
    %v527 = vpop.f32.mrb[0].mxu0
    %v528 = vadd.f32 %v335, %v527
    %v529 = vpop.f32.mrb[0].mxu0
    %530 = vmatprep.mubr.f32.mxu0 0.0
    %531 = vmatmul.mubr.f32.gmra.mrb[0].mxu0 %v451
    %v532 = vpop.f32.mrb[0].mxu0
    %v533 = vadd.f32 %v340, %v532
    %v534 = vpop.f32.mrb[0].mxu0
    %535 = vmatprep.mubr.f32.mxu0 0.0
    %536 = vmatmul.mubr.f32.gmra.mrb[0].mxu0 %v454
    %v537 = vpop.f32.mrb[0].mxu0
    %v538 = vadd.f32 %v345, %v537
    %v539 = vpop.f32.mrb[0].mxu0
    %540 = vdwg.mxu0
    %vm541 = vcmask 64512
    %v543 = vsel %vm541, %v199, 0
    %545 = vmatprep.subr.mxu0 0.0
    %546 = vmatpush1.msra.mxu0 %v426
    %547 = vmatprep.subr.mxu0 0.0
    %548 = vmatpush1.msra.mxu0 0.0
    %549 = vmatprep.subr.mxu0 0.0
    %550 = vmatpush1.msra.mxu0 0.0
    %551 = vmatprep.subr.mxu0 0.0
    %552 = vmatpush1.msra.mxu0 0.0
    %553 = vmatprep.subr.mxu0 0.0
    %554 = vmatpush1.msra.mxu0 0.0
    %555 = vmatprep.subr.mxu0 0.0
    %556 = vmatpush1.msra.mxu0 0.0
    %557 = vmatprep.subr.mxu0 0.0
    %558 = vmatpush1.msra.mxu0 0.0
    %559 = vmatprep.subr.mxu0 0.0
    %560 = vmatpush1.msra.mxu0 0.0
    %561 = vmatprep.subr.mxu0 0.0
    %562 = vmatpush1.msra.mxu0 0.0
    %563 = vmatprep.subr.mxu0 0.0
    %564 = vmatpush1.msra.mxu0 0.0
    %565 = vmatprep.subr.mxu0 0.0
    %566 = vmatpush1.msra.mxu0 0.0
    %567 = vmatprep.subr.mxu0 0.0
    %568 = vmatpush1.msra.mxu0 0.0
    %569 = vmatprep.subr.mxu0 0.0
    %570 = vmatpush1.msra.mxu0 0.0
    %571 = vmatprep.subr.mxu0 0.0
    %572 = vmatpush1.msra.mxu0 0.0
    %573 = vmatprep.subr.mxu0 0.0
    %574 = vmatpush1.msra.mxu0 0.0
    %575 = vmatprep.subr.mxu0 0.0
    %576 = vmatpush1.msra.mxu0 0.0
    %577 = vmatprep.subr.mxu0 0.0
    %578 = vmatpush1.msra.mxu0 0.0
    %579 = vmatprep.subr.mxu0 0.0
    %580 = vmatpush1.msra.mxu0 0.0
    %581 = vmatprep.subr.mxu0 0.0
    %582 = vmatpush1.msra.mxu0 0.0
    %583 = vmatprep.subr.mxu0 0.0
    %584 = vmatpush1.msra.mxu0 0.0
    %585 = vmatprep.subr.mxu0 0.0
    %586 = vmatpush1.msra.mxu0 0.0
    %587 = vmatprep.subr.mxu0 0.0
    %588 = vmatpush1.msra.mxu0 0.0
    %589 = vmatprep.subr.mxu0 0.0
    %590 = vmatpush1.msra.mxu0 0.0
    %591 = vmatprep.subr.mxu0 0.0
    %592 = vmatpush1.msra.mxu0 0.0
    %593 = vmatprep.subr.mxu0 0.0
    %594 = vmatpush1.msra.mxu0 0.0
    %595 = vmatprep.subr.mxu0 0.0
    %596 = vmatpush1.msra.mxu0 0.0
    %597 = vmatprep.subr.mxu0 0.0
    %598 = vmatpush1.msra.mxu0 0.0
    %599 = vmatprep.subr.mxu0 0.0
    %600 = vmatpush1.msra.mxu0 0.0
    %601 = vmatprep.subr.mxu0 0.0
    %602 = vmatpush1.msra.mxu0 0.0
    %603 = vmatprep.subr.mxu0 0.0
    %604 = vmatpush1.msra.mxu0 0.0
    %605 = vmatprep.subr.mxu0 0.0
    %606 = vmatpush1.msra.mxu0 0.0
    %607 = vmatprep.subr.mxu0 0.0
    %608 = vmatpush1.msra.mxu0 0.0
    %609 = vmatprep.mubr.f32.mxu0 0.0
    %610 = vmatmul.mubr.f32.gmra.mrb[0].mxu0 %v543
    %v611 = vpop.f32.mrb[0].mxu0
    %v612 = vadd.f32 0.0, %v611
    %v613 = vpop.f32.mrb[0].mxu0
    %614 = vdwg.mxu0
    %v616 = vsel %vm541, %v204, 0
    %618 = vmatprep.subr.mxu0 0.0
    %619 = vmatpush1.msra.mxu0 %v523
    %620 = vmatprep.subr.mxu0 0.0
    %621 = vmatpush1.msra.mxu0 0.0
    %622 = vmatprep.subr.mxu0 0.0
    %623 = vmatpush1.msra.mxu0 0.0
    %624 = vmatprep.subr.mxu0 0.0
    %625 = vmatpush1.msra.mxu0 0.0
    %626 = vmatprep.subr.mxu0 0.0
    %627 = vmatpush1.msra.mxu0 0.0
    %628 = vmatprep.subr.mxu0 0.0
    %629 = vmatpush1.msra.mxu0 0.0
    %630 = vmatprep.subr.mxu0 0.0
    %631 = vmatpush1.msra.mxu0 0.0
    %632 = vmatprep.subr.mxu0 0.0
    %633 = vmatpush1.msra.mxu0 0.0
    %634 = vmatprep.subr.mxu0 0.0
    %635 = vmatpush1.msra.mxu0 0.0
    %636 = vmatprep.subr.mxu0 0.0
    %637 = vmatpush1.msra.mxu0 0.0
    %638 = vmatprep.subr.mxu0 0.0
    %639 = vmatpush1.msra.mxu0 0.0
    %640 = vmatprep.subr.mxu0 0.0
    %641 = vmatpush1.msra.mxu0 0.0
    %642 = vmatprep.subr.mxu0 0.0
    %643 = vmatpush1.msra.mxu0 0.0
    %644 = vmatprep.subr.mxu0 0.0
    %645 = vmatpush1.msra.mxu0 0.0
    %646 = vmatprep.subr.mxu0 0.0
    %647 = vmatpush1.msra.mxu0 0.0
    %648 = vmatprep.subr.mxu0 0.0
    %649 = vmatpush1.msra.mxu0 0.0
    %650 = vmatprep.subr.mxu0 0.0
    %651 = vmatpush1.msra.mxu0 0.0
    %652 = vmatprep.subr.mxu0 0.0
    %653 = vmatpush1.msra.mxu0 0.0
    %654 = vmatprep.subr.mxu0 0.0
    %655 = vmatpush1.msra.mxu0 0.0
    %656 = vmatprep.subr.mxu0 0.0
    %657 = vmatpush1.msra.mxu0 0.0
    %658 = vmatprep.subr.mxu0 0.0
    %659 = vmatpush1.msra.mxu0 0.0
    %660 = vmatprep.subr.mxu0 0.0
    %661 = vmatpush1.msra.mxu0 0.0
    %662 = vmatprep.subr.mxu0 0.0
    %663 = vmatpush1.msra.mxu0 0.0
    %664 = vmatprep.subr.mxu0 0.0
    %665 = vmatpush1.msra.mxu0 0.0
    %666 = vmatprep.subr.mxu0 0.0
    %667 = vmatpush1.msra.mxu0 0.0
    %668 = vmatprep.subr.mxu0 0.0
    %669 = vmatpush1.msra.mxu0 0.0
    %670 = vmatprep.subr.mxu0 0.0
    %671 = vmatpush1.msra.mxu0 0.0
    %672 = vmatprep.subr.mxu0 0.0
    %673 = vmatpush1.msra.mxu0 0.0
    %674 = vmatprep.subr.mxu0 0.0
    %675 = vmatpush1.msra.mxu0 0.0
    %676 = vmatprep.subr.mxu0 0.0
    %677 = vmatpush1.msra.mxu0 0.0
    %678 = vmatprep.subr.mxu0 0.0
    %679 = vmatpush1.msra.mxu0 0.0
    %680 = vmatprep.subr.mxu0 0.0
    %681 = vmatpush1.msra.mxu0 0.0
    %682 = vmatprep.mubr.f32.mxu0 0.0
    %683 = vmatmul.mubr.f32.gmra.mrb[0].mxu0 %v616
    %v684 = vpop.f32.mrb[0].mxu0
    %v685 = vadd.f32 0.0, %v684
    %v686 = vpop.f32.mrb[0].mxu0
    %687 = vdwg.mxu0
    %vm688 = vcmask 130048
    %v689 = vsel %vm688, %v612, -inf
    %690 = vmax.xlane.f32.xlu0 %v689
    %v691 = vpop.xlane.xlu0 %690
    %v692 = vsel %vm688, %v685, -inf
    %693 = vmax.xlane.f32.xlu0 %v692
    %v694 = vpop.xlane.xlu0 %693
    %v695 = vsub.f32 %v612, %v691
    %v696 = vsub.f32 %v685, %v694
    %v697 = vmul.f32 %v695, 1.442695
    %v698 = vpow.pop %v697
    %v699 = vmul.f32 %v696, 1.442695
    %v700 = vpow.pop %v699
    %v701 = vsel %vm688, %v698, 0.0
    %702 = vadd.xlane.f32.xlu0 %v701
    %v703 = vpop.xlane.xlu0 %702
    %v704 = vsel %vm688, %v700, 0.0
    %705 = vadd.xlane.f32.xlu0 %v704
    %v706 = vpop.xlane.xlu0 %705
    %v708 = vsel %vm688, %v698, 0
    %710 = vmatprep.subr.mxu0 0.0
    %711 = vmatpush1.msra.mxu0 %v297
    %712 = vmatprep.subr.mxu0 0.0
    %713 = vmatpush1.msra.mxu0 %v302
    %714 = vmatprep.subr.mxu0 0.0
    %715 = vmatpush1.msra.mxu0 0.0
    %716 = vmatprep.subr.mxu0 0.0
    %717 = vmatpush1.msra.mxu0 0.0
    %718 = vmatprep.subr.mxu0 0.0
    %719 = vmatpush1.msra.mxu0 0.0
    %720 = vmatprep.subr.mxu0 0.0
    %721 = vmatpush1.msra.mxu0 0.0
    %722 = vmatprep.subr.mxu0 0.0
    %723 = vmatpush1.msra.mxu0 0.0
    %724 = vmatprep.subr.mxu0 0.0
    %725 = vmatpush1.msra.mxu0 0.0
    %726 = vmatprep.subr.mxu0 0.0
    %727 = vmatpush1.msra.mxu0 0.0
    %728 = vmatprep.subr.mxu0 0.0
    %729 = vmatpush1.msra.mxu0 0.0
    %730 = vmatprep.subr.mxu0 0.0
    %731 = vmatpush1.msra.mxu0 0.0
    %732 = vmatprep.subr.mxu0 0.0
    %733 = vmatpush1.msra.mxu0 0.0
    %734 = vmatprep.subr.mxu0 0.0
    %735 = vmatpush1.msra.mxu0 0.0
    %736 = vmatprep.subr.mxu0 0.0
    %737 = vmatpush1.msra.mxu0 0.0
    %738 = vmatprep.subr.mxu0 0.0
    %739 = vmatpush1.msra.mxu0 0.0
    %740 = vmatprep.subr.mxu0 0.0
    %741 = vmatpush1.msra.mxu0 0.0
    %742 = vmatprep.subr.mxu0 0.0
    %743 = vmatpush1.msra.mxu0 0.0
    %744 = vmatprep.subr.mxu0 0.0
    %745 = vmatpush1.msra.mxu0 0.0
    %746 = vmatprep.subr.mxu0 0.0
    %747 = vmatpush1.msra.mxu0 0.0
    %748 = vmatprep.subr.mxu0 0.0
    %749 = vmatpush1.msra.mxu0 0.0
    %750 = vmatprep.subr.mxu0 0.0
    %751 = vmatpush1.msra.mxu0 0.0
    %752 = vmatprep.subr.mxu0 0.0
    %753 = vmatpush1.msra.mxu0 0.0
    %754 = vmatprep.subr.mxu0 0.0
    %755 = vmatpush1.msra.mxu0 0.0
    %756 = vmatprep.subr.mxu0 0.0
    %757 = vmatpush1.msra.mxu0 0.0
    %758 = vmatprep.subr.mxu0 0.0
    %759 = vmatpush1.msra.mxu0 0.0
    %760 = vmatprep.subr.mxu0 0.0
    %761 = vmatpush1.msra.mxu0 0.0
    %762 = vmatprep.subr.mxu0 0.0
    %763 = vmatpush1.msra.mxu0 0.0
    %764 = vmatprep.subr.mxu0 0.0
    %765 = vmatpush1.msra.mxu0 0.0
    %766 = vmatprep.subr.mxu0 0.0
    %767 = vmatpush1.msra.mxu0 0.0
    %768 = vmatprep.subr.mxu0 0.0
    %769 = vmatpush1.msra.mxu0 0.0
    %770 = vmatprep.subr.mxu0 0.0
    %771 = vmatpush1.msra.mxu0 0.0
    %772 = vmatprep.subr.mxu0 0.0
    %773 = vmatpush1.msra.mxu0 0.0
    %774 = vmatprep.mubr.f32.mxu0 0.0
    %775 = vmatmul.mubr.f32.gmra.mrb[0].mxu0 %v708
    %v776 = vpop.f32.mrb[0].mxu0
    %v777 = vadd.f32 0.0, %v776
    %v778 = vpop.f32.mrb[0].mxu0
    %779 = vdwg.mxu0
    %v781 = vsel %vm688, %v700, 0
    %783 = vmatprep.subr.mxu0 0.0
    %784 = vmatpush1.msra.mxu0 %v307
    %785 = vmatprep.subr.mxu0 0.0
    %786 = vmatpush1.msra.mxu0 %v312
    %787 = vmatprep.subr.mxu0 0.0
    %788 = vmatpush1.msra.mxu0 0.0
    %789 = vmatprep.subr.mxu0 0.0
    %790 = vmatpush1.msra.mxu0 0.0
    %791 = vmatprep.subr.mxu0 0.0
    %792 = vmatpush1.msra.mxu0 0.0
    %793 = vmatprep.subr.mxu0 0.0
    %794 = vmatpush1.msra.mxu0 0.0
    %795 = vmatprep.subr.mxu0 0.0
    %796 = vmatpush1.msra.mxu0 0.0
    %797 = vmatprep.subr.mxu0 0.0
    %798 = vmatpush1.msra.mxu0 0.0
    %799 = vmatprep.subr.mxu0 0.0
    %800 = vmatpush1.msra.mxu0 0.0
    %801 = vmatprep.subr.mxu0 0.0
    %802 = vmatpush1.msra.mxu0 0.0
    %803 = vmatprep.subr.mxu0 0.0
    %804 = vmatpush1.msra.mxu0 0.0
    %805 = vmatprep.subr.mxu0 0.0
    %806 = vmatpush1.msra.mxu0 0.0
    %807 = vmatprep.subr.mxu0 0.0
    %808 = vmatpush1.msra.mxu0 0.0
    %809 = vmatprep.subr.mxu0 0.0
    %810 = vmatpush1.msra.mxu0 0.0
    %811 = vmatprep.subr.mxu0 0.0
    %812 = vmatpush1.msra.mxu0 0.0
    %813 = vmatprep.subr.mxu0 0.0
    %814 = vmatpush1.msra.mxu0 0.0
    %815 = vmatprep.subr.mxu0 0.0
    %816 = vmatpush1.msra.mxu0 0.0
    %817 = vmatprep.subr.mxu0 0.0
    %818 = vmatpush1.msra.mxu0 0.0
    %819 = vmatprep.subr.mxu0 0.0
    %820 = vmatpush1.msra.mxu0 0.0
    %821 = vmatprep.subr.mxu0 0.0
    %822 = vmatpush1.msra.mxu0 0.0
    %823 = vmatprep.subr.mxu0 0.0
    %824 = vmatpush1.msra.mxu0 0.0
    %825 = vmatprep.subr.mxu0 0.0
    %826 = vmatpush1.msra.mxu0 0.0
    %827 = vmatprep.subr.mxu0 0.0
    %828 = vmatpush1.msra.mxu0 0.0
    %829 = vmatprep.subr.mxu0 0.0
    %830 = vmatpush1.msra.mxu0 0.0
    %831 = vmatprep.subr.mxu0 0.0
    %832 = vmatpush1.msra.mxu0 0.0
    %833 = vmatprep.subr.mxu0 0.0
    %834 = vmatpush1.msra.mxu0 0.0
    %835 = vmatprep.subr.mxu0 0.0
    %836 = vmatpush1.msra.mxu0 0.0
    %837 = vmatprep.subr.mxu0 0.0
    %838 = vmatpush1.msra.mxu0 0.0
    %839 = vmatprep.subr.mxu0 0.0
    %840 = vmatpush1.msra.mxu0 0.0
    %841 = vmatprep.subr.mxu0 0.0
    %842 = vmatpush1.msra.mxu0 0.0
    %843 = vmatprep.subr.mxu0 0.0
    %844 = vmatpush1.msra.mxu0 0.0
    %845 = vmatprep.subr.mxu0 0.0
    %846 = vmatpush1.msra.mxu0 0.0
    %847 = vmatprep.mubr.f32.mxu0 0.0
    %848 = vmatmul.mubr.f32.gmra.mrb[0].mxu0 %v781
    %v849 = vpop.f32.mrb[0].mxu0
    %v850 = vadd.f32 0.0, %v849
    %v851 = vpop.f32.mrb[0].mxu0
    %852 = vdwg.mxu0
    %v853 = vrcp.pop %v703
    %v854 = vrcp.pop %v706
    %v855 = vmul.f32 %v777, %v853
    %v856 = vmul.f32 %v850, %v854
    %v857 = vld [vmem:[#allocation8] sm:$0xff]
    %858 = vrot.lane.b32.xlu0 %v199, 120
    %v859 = vpop.permute.xlu0 %858
    %v860 = vsel %vm541, %v859, 0
    %862 = vmatprep.subr.mxu0 0.0
    %863 = vmatpush1.msra.mxu0 %v431
    %864 = vmatprep.subr.mxu0 0.0
    %865 = vmatpush1.msra.mxu0 0.0
    %866 = vmatprep.subr.mxu0 0.0
    %867 = vmatpush1.msra.mxu0 0.0
    %868 = vmatprep.subr.mxu0 0.0
    %869 = vmatpush1.msra.mxu0 0.0
    %870 = vmatprep.subr.mxu0 0.0
    %871 = vmatpush1.msra.mxu0 0.0
    %872 = vmatprep.subr.mxu0 0.0
    %873 = vmatpush1.msra.mxu0 0.0
    %874 = vmatprep.subr.mxu0 0.0
    %875 = vmatpush1.msra.mxu0 0.0
    %876 = vmatprep.subr.mxu0 0.0
    %877 = vmatpush1.msra.mxu0 0.0
    %878 = vmatprep.subr.mxu0 0.0
    %879 = vmatpush1.msra.mxu0 0.0
    %880 = vmatprep.subr.mxu0 0.0
    %881 = vmatpush1.msra.mxu0 0.0
    %882 = vmatprep.subr.mxu0 0.0
    %883 = vmatpush1.msra.mxu0 0.0
    %884 = vmatprep.subr.mxu0 0.0
    %885 = vmatpush1.msra.mxu0 0.0
    %886 = vmatprep.subr.mxu0 0.0
    %887 = vmatpush1.msra.mxu0 0.0
    %888 = vmatprep.subr.mxu0 0.0
    %889 = vmatpush1.msra.mxu0 0.0
    %890 = vmatprep.subr.mxu0 0.0
    %891 = vmatpush1.msra.mxu0 0.0
    %892 = vmatprep.subr.mxu0 0.0
    %893 = vmatpush1.msra.mxu0 0.0
    %894 = vmatprep.subr.mxu0 0.0
    %895 = vmatpush1.msra.mxu0 0.0
    %896 = vmatprep.subr.mxu0 0.0
    %897 = vmatpush1.msra.mxu0 0.0
    %898 = vmatprep.subr.mxu0 0.0
    %899 = vmatpush1.msra.mxu0 0.0
    %900 = vmatprep.subr.mxu0 0.0
    %901 = vmatpush1.msra.mxu0 0.0
    %902 = vmatprep.subr.mxu0 0.0
    %903 = vmatpush1.msra.mxu0 0.0
    %904 = vmatprep.subr.mxu0 0.0
    %905 = vmatpush1.msra.mxu0 0.0
    %906 = vmatprep.subr.mxu0 0.0
    %907 = vmatpush1.msra.mxu0 0.0
    %908 = vmatprep.subr.mxu0 0.0
    %909 = vmatpush1.msra.mxu0 0.0
    %910 = vmatprep.subr.mxu0 0.0
    %911 = vmatpush1.msra.mxu0 0.0
    %912 = vmatprep.subr.mxu0 0.0
    %913 = vmatpush1.msra.mxu0 0.0
    %914 = vmatprep.subr.mxu0 0.0
    %915 = vmatpush1.msra.mxu0 0.0
    %916 = vmatprep.subr.mxu0 0.0
    %917 = vmatpush1.msra.mxu0 0.0
    %918 = vmatprep.subr.mxu0 0.0
    %919 = vmatpush1.msra.mxu0 0.0
    %920 = vmatprep.subr.mxu0 0.0
    %921 = vmatpush1.msra.mxu0 0.0
    %922 = vmatprep.subr.mxu0 0.0
    %923 = vmatpush1.msra.mxu0 0.0
    %924 = vmatprep.subr.mxu0 0.0
    %925 = vmatpush1.msra.mxu0 0.0
    %926 = vmatprep.mubr.f32.mxu0 0.0
    %927 = vmatmul.mubr.f32.gmra.mrb[0].mxu0 %v860
    %v928 = vpop.f32.mrb[0].mxu0
    %v929 = vadd.f32 0.0, %v928
    %v930 = vpop.f32.mrb[0].mxu0
    %931 = vdwg.mxu0
    %932 = vrot.lane.b32.xlu0 %v204, 120
    %v933 = vpop.permute.xlu0 %932
    %v934 = vsel %vm541, %v933, 0
    %936 = vmatprep.subr.mxu0 0.0
    %937 = vmatpush1.msra.mxu0 %v528
    %938 = vmatprep.subr.mxu0 0.0
    %939 = vmatpush1.msra.mxu0 0.0
    %940 = vmatprep.subr.mxu0 0.0
    %941 = vmatpush1.msra.mxu0 0.0
    %942 = vmatprep.subr.mxu0 0.0
    %943 = vmatpush1.msra.mxu0 0.0
    %944 = vmatprep.subr.mxu0 0.0
    %945 = vmatpush1.msra.mxu0 0.0
    %946 = vmatprep.subr.mxu0 0.0
    %947 = vmatpush1.msra.mxu0 0.0
    %948 = vmatprep.subr.mxu0 0.0
    %949 = vmatpush1.msra.mxu0 0.0
    %950 = vmatprep.subr.mxu0 0.0
    %951 = vmatpush1.msra.mxu0 0.0
    %952 = vmatprep.subr.mxu0 0.0
    %953 = vmatpush1.msra.mxu0 0.0
    %954 = vmatprep.subr.mxu0 0.0
    %955 = vmatpush1.msra.mxu0 0.0
    %956 = vmatprep.subr.mxu0 0.0
    %957 = vmatpush1.msra.mxu0 0.0
    %958 = vmatprep.subr.mxu0 0.0
    %959 = vmatpush1.msra.mxu0 0.0
    %960 = vmatprep.subr.mxu0 0.0
    %961 = vmatpush1.msra.mxu0 0.0
    %962 = vmatprep.subr.mxu0 0.0
    %963 = vmatpush1.msra.mxu0 0.0
    %964 = vmatprep.subr.mxu0 0.0
    %965 = vmatpush1.msra.mxu0 0.0
    %966 = vmatprep.subr.mxu0 0.0
    %967 = vmatpush1.msra.mxu0 0.0
    %968 = vmatprep.subr.mxu0 0.0
    %969 = vmatpush1.msra.mxu0 0.0
    %970 = vmatprep.subr.mxu0 0.0
    %971 = vmatpush1.msra.mxu0 0.0
    %972 = vmatprep.subr.mxu0 0.0
    %973 = vmatpush1.msra.mxu0 0.0
    %974 = vmatprep.subr.mxu0 0.0
    %975 = vmatpush1.msra.mxu0 0.0
    %976 = vmatprep.subr.mxu0 0.0
    %977 = vmatpush1.msra.mxu0 0.0
    %978 = vmatprep.subr.mxu0 0.0
    %979 = vmatpush1.msra.mxu0 0.0
    %980 = vmatprep.subr.mxu0 0.0
    %981 = vmatpush1.msra.mxu0 0.0
    %982 = vmatprep.subr.mxu0 0.0
    %983 = vmatpush1.msra.mxu0 0.0
    %984 = vmatprep.subr.mxu0 0.0
    %985 = vmatpush1.msra.mxu0 0.0
    %986 = vmatprep.subr.mxu0 0.0
    %987 = vmatpush1.msra.mxu0 0.0
    %988 = vmatprep.subr.mxu0 0.0
    %989 = vmatpush1.msra.mxu0 0.0
    %990 = vmatprep.subr.mxu0 0.0
    %991 = vmatpush1.msra.mxu0 0.0
    %992 = vmatprep.subr.mxu0 0.0
    %993 = vmatpush1.msra.mxu0 0.0
    %994 = vmatprep.subr.mxu0 0.0
    %995 = vmatpush1.msra.mxu0 0.0
    %996 = vmatprep.subr.mxu0 0.0
    %997 = vmatpush1.msra.mxu0 0.0
    %998 = vmatprep.subr.mxu0 0.0
    %999 = vmatpush1.msra.mxu0 0.0
    %1000 = vmatprep.mubr.f32.mxu0 0.0
    %1001 = vmatmul.mubr.f32.gmra.mrb[0].mxu0 %v934
    %v1002 = vpop.f32.mrb[0].mxu0
    %v1003 = vadd.f32 0.0, %v1002
    %v1004 = vpop.f32.mrb[0].mxu0
    %1005 = vdwg.mxu0
    %v1006 = vsel %vm688, %v929, -inf
    %1007 = vmax.xlane.f32.xlu0 %v1006
    %v1008 = vpop.xlane.xlu0 %1007
    %v1009 = vsel %vm688, %v1003, -inf
    %1010 = vmax.xlane.f32.xlu0 %v1009
    %v1011 = vpop.xlane.xlu0 %1010
    %v1012 = vsub.f32 %v929, %v1008
    %v1013 = vsub.f32 %v1003, %v1011
    %v1014 = vmul.f32 %v1012, 1.442695
    %v1015 = vpow.pop %v1014
    %v1016 = vmul.f32 %v1013, 1.442695
    %v1017 = vpow.pop %v1016
    %v1018 = vsel %vm688, %v1015, 0.0
    %1019 = vadd.xlane.f32.xlu0 %v1018
    %v1020 = vpop.xlane.xlu0 %1019
    %v1021 = vsel %vm688, %v1017, 0.0
    %1022 = vadd.xlane.f32.xlu0 %v1021
    %v1023 = vpop.xlane.xlu0 %1022
    %1026 = vrot.lane.b32.xlu0 %v297, 120
    %v1027 = vpop.permute.xlu0 %1026
    %1028 = vrot.lane.b32.xlu0 %v302, 120
    %v1029 = vpop.permute.xlu0 %1028
    %v1033 = vsel %vm688, %v1015, 0
    %1035 = vmatprep.subr.mxu0 0.0
    %1036 = vmatpush1.msra.mxu0 %v1027
    %1037 = vmatprep.subr.mxu0 0.0
    %1038 = vmatpush1.msra.mxu0 %v1029
    %1039 = vmatprep.subr.mxu0 0.0
    %1040 = vmatpush1.msra.mxu0 0.0
    %1041 = vmatprep.subr.mxu0 0.0
    %1042 = vmatpush1.msra.mxu0 0.0
    %1043 = vmatprep.subr.mxu0 0.0
    %1044 = vmatpush1.msra.mxu0 0.0
    %1045 = vmatprep.subr.mxu0 0.0
    %1046 = vmatpush1.msra.mxu0 0.0
    %1047 = vmatprep.subr.mxu0 0.0
    %1048 = vmatpush1.msra.mxu0 0.0
    %1049 = vmatprep.subr.mxu0 0.0
    %1050 = vmatpush1.msra.mxu0 0.0
    %1051 = vmatprep.subr.mxu0 0.0
    %1052 = vmatpush1.msra.mxu0 0.0
    %1053 = vmatprep.subr.mxu0 0.0
    %1054 = vmatpush1.msra.mxu0 0.0
    %1055 = vmatprep.subr.mxu0 0.0
    %1056 = vmatpush1.msra.mxu0 0.0
    %1057 = vmatprep.subr.mxu0 0.0
    %1058 = vmatpush1.msra.mxu0 0.0
    %1059 = vmatprep.subr.mxu0 0.0
    %1060 = vmatpush1.msra.mxu0 0.0
    %1061 = vmatprep.subr.mxu0 0.0
    %1062 = vmatpush1.msra.mxu0 0.0
    %1063 = vmatprep.subr.mxu0 0.0
    %1064 = vmatpush1.msra.mxu0 0.0
    %1065 = vmatprep.subr.mxu0 0.0
    %1066 = vmatpush1.msra.mxu0 0.0
    %1067 = vmatprep.subr.mxu0 0.0
    %1068 = vmatpush1.msra.mxu0 0.0
    %1069 = vmatprep.subr.mxu0 0.0
    %1070 = vmatpush1.msra.mxu0 0.0
    %1071 = vmatprep.subr.mxu0 0.0
    %1072 = vmatpush1.msra.mxu0 0.0
    %1073 = vmatprep.subr.mxu0 0.0
    %1074 = vmatpush1.msra.mxu0 0.0
    %1075 = vmatprep.subr.mxu0 0.0
    %1076 = vmatpush1.msra.mxu0 0.0
    %1077 = vmatprep.subr.mxu0 0.0
    %1078 = vmatpush1.msra.mxu0 0.0
    %1079 = vmatprep.subr.mxu0 0.0
    %1080 = vmatpush1.msra.mxu0 0.0
    %1081 = vmatprep.subr.mxu0 0.0
    %1082 = vmatpush1.msra.mxu0 0.0
    %1083 = vmatprep.subr.mxu0 0.0
    %1084 = vmatpush1.msra.mxu0 0.0
    %1085 = vmatprep.subr.mxu0 0.0
    %1086 = vmatpush1.msra.mxu0 0.0
    %1087 = vmatprep.subr.mxu0 0.0
    %1088 = vmatpush1.msra.mxu0 0.0
    %1089 = vmatprep.subr.mxu0 0.0
    %1090 = vmatpush1.msra.mxu0 0.0
    %1091 = vmatprep.subr.mxu0 0.0
    %1092 = vmatpush1.msra.mxu0 0.0
    %1093 = vmatprep.subr.mxu0 0.0
    %1094 = vmatpush1.msra.mxu0 0.0
    %1095 = vmatprep.subr.mxu0 0.0
    %1096 = vmatpush1.msra.mxu0 0.0
    %1097 = vmatprep.subr.mxu0 0.0
    %1098 = vmatpush1.msra.mxu0 0.0
    %1099 = vmatprep.mubr.f32.mxu0 0.0
    %1100 = vmatmul.mubr.f32.gmra.mrb[0].mxu0 %v1033
    %v1101 = vpop.f32.mrb[0].mxu0
    %v1102 = vadd.f32 0.0, %v1101
    %v1103 = vpop.f32.mrb[0].mxu0
    %1104 = vdwg.mxu0
    %1107 = vrot.lane.b32.xlu0 %v307, 120
    %v1108 = vpop.permute.xlu0 %1107
    %1109 = vrot.lane.b32.xlu0 %v312, 120
    %v1110 = vpop.permute.xlu0 %1109
    %v1114 = vsel %vm688, %v1017, 0
    %1116 = vmatprep.subr.mxu0 0.0
    %1117 = vmatpush1.msra.mxu0 %v1108
    %1118 = vmatprep.subr.mxu0 0.0
    %1119 = vmatpush1.msra.mxu0 %v1110
    %1120 = vmatprep.subr.mxu0 0.0
    %1121 = vmatpush1.msra.mxu0 0.0
    %1122 = vmatprep.subr.mxu0 0.0
    %1123 = vmatpush1.msra.mxu0 0.0
    %1124 = vmatprep.subr.mxu0 0.0
    %1125 = vmatpush1.msra.mxu0 0.0
    %1126 = vmatprep.subr.mxu0 0.0
    %1127 = vmatpush1.msra.mxu0 0.0
    %1128 = vmatprep.subr.mxu0 0.0
    %1129 = vmatpush1.msra.mxu0 0.0
    %1130 = vmatprep.subr.mxu0 0.0
    %1131 = vmatpush1.msra.mxu0 0.0
    %1132 = vmatprep.subr.mxu0 0.0
    %1133 = vmatpush1.msra.mxu0 0.0
    %1134 = vmatprep.subr.mxu0 0.0
    %1135 = vmatpush1.msra.mxu0 0.0
    %1136 = vmatprep.subr.mxu0 0.0
    %1137 = vmatpush1.msra.mxu0 0.0
    %1138 = vmatprep.subr.mxu0 0.0
    %1139 = vmatpush1.msra.mxu0 0.0
    %1140 = vmatprep.subr.mxu0 0.0
    %1141 = vmatpush1.msra.mxu0 0.0
    %1142 = vmatprep.subr.mxu0 0.0
    %1143 = vmatpush1.msra.mxu0 0.0
    %1144 = vmatprep.subr.mxu0 0.0
    %1145 = vmatpush1.msra.mxu0 0.0
    %1146 = vmatprep.subr.mxu0 0.0
    %1147 = vmatpush1.msra.mxu0 0.0
    %1148 = vmatprep.subr.mxu0 0.0
    %1149 = vmatpush1.msra.mxu0 0.0
    %1150 = vmatprep.subr.mxu0 0.0
    %1151 = vmatpush1.msra.mxu0 0.0
    %1152 = vmatprep.subr.mxu0 0.0
    %1153 = vmatpush1.msra.mxu0 0.0
    %1154 = vmatprep.subr.mxu0 0.0
    %1155 = vmatpush1.msra.mxu0 0.0
    %1156 = vmatprep.subr.mxu0 0.0
    %1157 = vmatpush1.msra.mxu0 0.0
    %1158 = vmatprep.subr.mxu0 0.0
    %1159 = vmatpush1.msra.mxu0 0.0
    %1160 = vmatprep.subr.mxu0 0.0
    %1161 = vmatpush1.msra.mxu0 0.0
    %1162 = vmatprep.subr.mxu0 0.0
    %1163 = vmatpush1.msra.mxu0 0.0
    %1164 = vmatprep.subr.mxu0 0.0
    %1165 = vmatpush1.msra.mxu0 0.0
    %1166 = vmatprep.subr.mxu0 0.0
    %1167 = vmatpush1.msra.mxu0 0.0
    %1168 = vmatprep.subr.mxu0 0.0
    %1169 = vmatpush1.msra.mxu0 0.0
    %1170 = vmatprep.subr.mxu0 0.0
    %1171 = vmatpush1.msra.mxu0 0.0
    %1172 = vmatprep.subr.mxu0 0.0
    %1173 = vmatpush1.msra.mxu0 0.0
    %1174 = vmatprep.subr.mxu0 0.0
    %1175 = vmatpush1.msra.mxu0 0.0
    %1176 = vmatprep.subr.mxu0 0.0
    %1177 = vmatpush1.msra.mxu0 0.0
    %1178 = vmatprep.subr.mxu0 0.0
    %1179 = vmatpush1.msra.mxu0 0.0
    %1180 = vmatprep.mubr.f32.mxu0 0.0
    %1181 = vmatmul.mubr.f32.gmra.mrb[0].mxu0 %v1114
    %v1182 = vpop.f32.mrb[0].mxu0
    %v1183 = vadd.f32 0.0, %v1182
    %v1184 = vpop.f32.mrb[0].mxu0
    %1185 = vdwg.mxu0
    %v1186 = vrcp.pop %v1020
    %v1187 = vrcp.pop %v1023
    %v1188 = vmul.f32 %v1102, %v1186
    %v1189 = vmul.f32 %v1183, %v1187
    %s1190 = scalar_lea.vmem [#allocation8], 8
    %v1191 = vld [vmem:[%s1190] sm:$0xff]
    %v1193 = vsel %vm541, %v1188, 0
    %v1196 = vsel %vm541, %v1189, 0
    %1198 = vmatprep.subr.mxu0 0.0
    %1199 = vmatpush1.msra.mxu0 %v1191
    %1200 = vmatprep.subr.mxu0 0.0
    %1201 = vmatpush1.msra.mxu0 0.0
    %1202 = vmatprep.subr.mxu0 0.0
    %1203 = vmatpush1.msra.mxu0 0.0
    %1204 = vmatprep.subr.mxu0 0.0
    %1205 = vmatpush1.msra.mxu0 0.0
    %1206 = vmatprep.subr.mxu0 0.0
    %1207 = vmatpush1.msra.mxu0 0.0
    %1208 = vmatprep.subr.mxu0 0.0
    %1209 = vmatpush1.msra.mxu0 0.0
    %1210 = vmatprep.subr.mxu0 0.0
    %1211 = vmatpush1.msra.mxu0 0.0
    %1212 = vmatprep.subr.mxu0 0.0
    %1213 = vmatpush1.msra.mxu0 0.0
    %1214 = vmatprep.subr.mxu0 0.0
    %1215 = vmatpush1.msra.mxu0 0.0
    %1216 = vmatprep.subr.mxu0 0.0
    %1217 = vmatpush1.msra.mxu0 0.0
    %1218 = vmatprep.subr.mxu0 0.0
    %1219 = vmatpush1.msra.mxu0 0.0
    %1220 = vmatprep.subr.mxu0 0.0
    %1221 = vmatpush1.msra.mxu0 0.0
    %1222 = vmatprep.subr.mxu0 0.0
    %1223 = vmatpush1.msra.mxu0 0.0
    %1224 = vmatprep.subr.mxu0 0.0
    %1225 = vmatpush1.msra.mxu0 0.0
    %1226 = vmatprep.subr.mxu0 0.0
    %1227 = vmatpush1.msra.mxu0 0.0
    %1228 = vmatprep.subr.mxu0 0.0
    %1229 = vmatpush1.msra.mxu0 0.0
    %1230 = vmatprep.subr.mxu0 0.0
    %1231 = vmatpush1.msra.mxu0 0.0
    %1232 = vmatprep.subr.mxu0 0.0
    %1233 = vmatpush1.msra.mxu0 0.0
    %1234 = vmatprep.subr.mxu0 0.0
    %1235 = vmatpush1.msra.mxu0 0.0
    %1236 = vmatprep.subr.mxu0 0.0
    %1237 = vmatpush1.msra.mxu0 0.0
    %1238 = vmatprep.subr.mxu0 0.0
    %1239 = vmatpush1.msra.mxu0 0.0
    %1240 = vmatprep.subr.mxu0 0.0
    %1241 = vmatpush1.msra.mxu0 0.0
    %1242 = vmatprep.subr.mxu0 0.0
    %1243 = vmatpush1.msra.mxu0 0.0
    %1244 = vmatprep.subr.mxu0 0.0
    %1245 = vmatpush1.msra.mxu0 0.0
    %1246 = vmatprep.subr.mxu0 0.0
    %1247 = vmatpush1.msra.mxu0 0.0
    %1248 = vmatprep.subr.mxu0 0.0
    %1249 = vmatpush1.msra.mxu0 0.0
    %1250 = vmatprep.subr.mxu0 0.0
    %1251 = vmatpush1.msra.mxu0 0.0
    %1252 = vmatprep.subr.mxu0 0.0
    %1253 = vmatpush1.msra.mxu0 0.0
    %1254 = vmatprep.subr.mxu0 0.0
    %1255 = vmatpush1.msra.mxu0 0.0
    %1256 = vmatprep.subr.mxu0 0.0
    %1257 = vmatpush1.msra.mxu0 0.0
    %1258 = vmatprep.subr.mxu0 0.0
    %1259 = vmatpush1.msra.mxu0 0.0
    %1260 = vmatprep.subr.mxu0 0.0
    %1261 = vmatpush1.msra.mxu0 0.0
    %1262 = vmatprep.mubr.f32.mxu0 0.0
    %1263 = vmatmul.mubr.f32.gmra.mrb[0].mxu0 %v1193
    %v1264 = vpop.f32.mrb[0].mxu0
    %v1265 = vadd.f32 0.0, %v1264
    %v1266 = vpop.f32.mrb[0].mxu0
    %1267 = vmatprep.mubr.f32.mxu0 0.0
    %1268 = vmatmul.mubr.f32.gmra.mrb[0].mxu0 %v1196
    %v1269 = vpop.f32.mrb[0].mxu0
    %v1270 = vadd.f32 0.0, %v1269
    %v1271 = vpop.f32.mrb[0].mxu0
    %1272 = vdwg.mxu0
    %v1274 = vsel %vm541, %v855, 0
    %v1277 = vsel %vm541, %v856, 0
    %1279 = vmatprep.subr.mxu0 0.0
    %1280 = vmatpush1.msra.mxu0 %v857
    %1281 = vmatprep.subr.mxu0 0.0
    %1282 = vmatpush1.msra.mxu0 0.0
    %1283 = vmatprep.subr.mxu0 0.0
    %1284 = vmatpush1.msra.mxu0 0.0
    %1285 = vmatprep.subr.mxu0 0.0
    %1286 = vmatpush1.msra.mxu0 0.0
    %1287 = vmatprep.subr.mxu0 0.0
    %1288 = vmatpush1.msra.mxu0 0.0
    %1289 = vmatprep.subr.mxu0 0.0
    %1290 = vmatpush1.msra.mxu0 0.0
    %1291 = vmatprep.subr.mxu0 0.0
    %1292 = vmatpush1.msra.mxu0 0.0
    %1293 = vmatprep.subr.mxu0 0.0
    %1294 = vmatpush1.msra.mxu0 0.0
    %1295 = vmatprep.subr.mxu0 0.0
    %1296 = vmatpush1.msra.mxu0 0.0
    %1297 = vmatprep.subr.mxu0 0.0
    %1298 = vmatpush1.msra.mxu0 0.0
    %1299 = vmatprep.subr.mxu0 0.0
    %1300 = vmatpush1.msra.mxu0 0.0
    %1301 = vmatprep.subr.mxu0 0.0
    %1302 = vmatpush1.msra.mxu0 0.0
    %1303 = vmatprep.subr.mxu0 0.0
    %1304 = vmatpush1.msra.mxu0 0.0
    %1305 = vmatprep.subr.mxu0 0.0
    %1306 = vmatpush1.msra.mxu0 0.0
    %1307 = vmatprep.subr.mxu0 0.0
    %1308 = vmatpush1.msra.mxu0 0.0
    %1309 = vmatprep.subr.mxu0 0.0
    %1310 = vmatpush1.msra.mxu0 0.0
    %1311 = vmatprep.subr.mxu0 0.0
    %1312 = vmatpush1.msra.mxu0 0.0
    %1313 = vmatprep.subr.mxu0 0.0
    %1314 = vmatpush1.msra.mxu0 0.0
    %1315 = vmatprep.subr.mxu0 0.0
    %1316 = vmatpush1.msra.mxu0 0.0
    %1317 = vmatprep.subr.mxu0 0.0
    %1318 = vmatpush1.msra.mxu0 0.0
    %1319 = vmatprep.subr.mxu0 0.0
    %1320 = vmatpush1.msra.mxu0 0.0
    %1321 = vmatprep.subr.mxu0 0.0
    %1322 = vmatpush1.msra.mxu0 0.0
    %1323 = vmatprep.subr.mxu0 0.0
    %1324 = vmatpush1.msra.mxu0 0.0
    %1325 = vmatprep.subr.mxu0 0.0
    %1326 = vmatpush1.msra.mxu0 0.0
    %1327 = vmatprep.subr.mxu0 0.0
    %1328 = vmatpush1.msra.mxu0 0.0
    %1329 = vmatprep.subr.mxu0 0.0
    %1330 = vmatpush1.msra.mxu0 0.0
    %1331 = vmatprep.subr.mxu0 0.0
    %1332 = vmatpush1.msra.mxu0 0.0
    %1333 = vmatprep.subr.mxu0 0.0
    %1334 = vmatpush1.msra.mxu0 0.0
    %1335 = vmatprep.subr.mxu0 0.0
    %1336 = vmatpush1.msra.mxu0 0.0
    %1337 = vmatprep.subr.mxu0 0.0
    %1338 = vmatpush1.msra.mxu0 0.0
    %1339 = vmatprep.subr.mxu0 0.0
    %1340 = vmatpush1.msra.mxu0 0.0
    %1341 = vmatprep.subr.mxu0 0.0
    %1342 = vmatpush1.msra.mxu0 0.0
    %1343 = vmatprep.mubr.f32.mxu0 0.0
    %1344 = vmatmul.mubr.f32.gmra.mrb[0].mxu0 %v1274
    %v1345 = vpop.f32.mrb[0].mxu0
    %v1346 = vadd.f32 %v1265, %v1345
    %v1347 = vpop.f32.mrb[0].mxu0
    %1348 = vmatprep.mubr.f32.mxu0 0.0
    %1349 = vmatmul.mubr.f32.gmra.mrb[0].mxu0 %v1277
    %v1350 = vpop.f32.mrb[0].mxu0
    %v1351 = vadd.f32 %v1270, %v1350
    %v1352 = vpop.f32.mrb[0].mxu0
    %1353 = vdwg.mxu0
    %1354 = vrot.lane.b32.xlu0 %v199, 112
    %v1355 = vpop.permute.xlu0 %1354
    %v1356 = vsel %vm541, %v1355, 0
    %1358 = vmatprep.subr.mxu0 0.0
    %1359 = vmatpush1.msra.mxu0 %v436
    %1360 = vmatprep.subr.mxu0 0.0
    %1361 = vmatpush1.msra.mxu0 0.0
    %1362 = vmatprep.subr.mxu0 0.0
    %1363 = vmatpush1.msra.mxu0 0.0
    %1364 = vmatprep.subr.mxu0 0.0
    %1365 = vmatpush1.msra.mxu0 0.0
    %1366 = vmatprep.subr.mxu0 0.0
    %1367 = vmatpush1.msra.mxu0 0.0
    %1368 = vmatprep.subr.mxu0 0.0
    %1369 = vmatpush1.msra.mxu0 0.0
    %1370 = vmatprep.subr.mxu0 0.0
    %1371 = vmatpush1.msra.mxu0 0.0
    %1372 = vmatprep.subr.mxu0 0.0
    %1373 = vmatpush1.msra.mxu0 0.0
    %1374 = vmatprep.subr.mxu0 0.0
    %1375 = vmatpush1.msra.mxu0 0.0
    %1376 = vmatprep.subr.mxu0 0.0
    %1377 = vmatpush1.msra.mxu0 0.0
    %1378 = vmatprep.subr.mxu0 0.0
    %1379 = vmatpush1.msra.mxu0 0.0
    %1380 = vmatprep.subr.mxu0 0.0
    %1381 = vmatpush1.msra.mxu0 0.0
    %1382 = vmatprep.subr.mxu0 0.0
    %1383 = vmatpush1.msra.mxu0 0.0
    %1384 = vmatprep.subr.mxu0 0.0
    %1385 = vmatpush1.msra.mxu0 0.0
    %1386 = vmatprep.subr.mxu0 0.0
    %1387 = vmatpush1.msra.mxu0 0.0
    %1388 = vmatprep.subr.mxu0 0.0
    %1389 = vmatpush1.msra.mxu0 0.0
    %1390 = vmatprep.subr.mxu0 0.0
    %1391 = vmatpush1.msra.mxu0 0.0
    %1392 = vmatprep.subr.mxu0 0.0
    %1393 = vmatpush1.msra.mxu0 0.0
    %1394 = vmatprep.subr.mxu0 0.0
    %1395 = vmatpush1.msra.mxu0 0.0
    %1396 = vmatprep.subr.mxu0 0.0
    %1397 = vmatpush1.msra.mxu0 0.0
    %1398 = vmatprep.subr.mxu0 0.0
    %1399 = vmatpush1.msra.mxu0 0.0
    %1400 = vmatprep.subr.mxu0 0.0
    %1401 = vmatpush1.msra.mxu0 0.0
    %1402 = vmatprep.subr.mxu0 0.0
    %1403 = vmatpush1.msra.mxu0 0.0
    %1404 = vmatprep.subr.mxu0 0.0
    %1405 = vmatpush1.msra.mxu0 0.0
    %1406 = vmatprep.subr.mxu0 0.0
    %1407 = vmatpush1.msra.mxu0 0.0
    %1408 = vmatprep.subr.mxu0 0.0
    %1409 = vmatpush1.msra.mxu0 0.0
    %1410 = vmatprep.subr.mxu0 0.0
    %1411 = vmatpush1.msra.mxu0 0.0
    %1412 = vmatprep.subr.mxu0 0.0
    %1413 = vmatpush1.msra.mxu0 0.0
    %1414 = vmatprep.subr.mxu0 0.0
    %1415 = vmatpush1.msra.mxu0 0.0
    %1416 = vmatprep.subr.mxu0 0.0
    %1417 = vmatpush1.msra.mxu0 0.0
    %1418 = vmatprep.subr.mxu0 0.0
    %1419 = vmatpush1.msra.mxu0 0.0
    %1420 = vmatprep.subr.mxu0 0.0
    %1421 = vmatpush1.msra.mxu0 0.0
    %1422 = vmatprep.mubr.f32.mxu0 0.0
    %1423 = vmatmul.mubr.f32.gmra.mrb[0].mxu0 %v1356
    %v1424 = vpop.f32.mrb[0].mxu0
    %v1425 = vadd.f32 0.0, %v1424
    %v1426 = vpop.f32.mrb[0].mxu0
    %1427 = vdwg.mxu0
    %1428 = vrot.lane.b32.xlu0 %v204, 112
    %v1429 = vpop.permute.xlu0 %1428
    %v1430 = vsel %vm541, %v1429, 0
    %1432 = vmatprep.subr.mxu0 0.0
    %1433 = vmatpush1.msra.mxu0 %v533
    %1434 = vmatprep.subr.mxu0 0.0
    %1435 = vmatpush1.msra.mxu0 0.0
    %1436 = vmatprep.subr.mxu0 0.0
    %1437 = vmatpush1.msra.mxu0 0.0
    %1438 = vmatprep.subr.mxu0 0.0
    %1439 = vmatpush1.msra.mxu0 0.0
    %1440 = vmatprep.subr.mxu0 0.0
    %1441 = vmatpush1.msra.mxu0 0.0
    %1442 = vmatprep.subr.mxu0 0.0
    %1443 = vmatpush1.msra.mxu0 0.0
    %1444 = vmatprep.subr.mxu0 0.0
    %1445 = vmatpush1.msra.mxu0 0.0
    %1446 = vmatprep.subr.mxu0 0.0
    %1447 = vmatpush1.msra.mxu0 0.0
    %1448 = vmatprep.subr.mxu0 0.0
    %1449 = vmatpush1.msra.mxu0 0.0
    %1450 = vmatprep.subr.mxu0 0.0
    %1451 = vmatpush1.msra.mxu0 0.0
    %1452 = vmatprep.subr.mxu0 0.0
    %1453 = vmatpush1.msra.mxu0 0.0
    %1454 = vmatprep.subr.mxu0 0.0
    %1455 = vmatpush1.msra.mxu0 0.0
    %1456 = vmatprep.subr.mxu0 0.0
    %1457 = vmatpush1.msra.mxu0 0.0
    %1458 = vmatprep.subr.mxu0 0.0
    %1459 = vmatpush1.msra.mxu0 0.0
    %1460 = vmatprep.subr.mxu0 0.0
    %1461 = vmatpush1.msra.mxu0 0.0
    %1462 = vmatprep.subr.mxu0 0.0
    %1463 = vmatpush1.msra.mxu0 0.0
    %1464 = vmatprep.subr.mxu0 0.0
    %1465 = vmatpush1.msra.mxu0 0.0
    %1466 = vmatprep.subr.mxu0 0.0
    %1467 = vmatpush1.msra.mxu0 0.0
    %1468 = vmatprep.subr.mxu0 0.0
    %1469 = vmatpush1.msra.mxu0 0.0
    %1470 = vmatprep.subr.mxu0 0.0
    %1471 = vmatpush1.msra.mxu0 0.0
    %1472 = vmatprep.subr.mxu0 0.0
    %1473 = vmatpush1.msra.mxu0 0.0
    %1474 = vmatprep.subr.mxu0 0.0
    %1475 = vmatpush1.msra.mxu0 0.0
    %1476 = vmatprep.subr.mxu0 0.0
    %1477 = vmatpush1.msra.mxu0 0.0
    %1478 = vmatprep.subr.mxu0 0.0
    %1479 = vmatpush1.msra.mxu0 0.0
    %1480 = vmatprep.subr.mxu0 0.0
    %1481 = vmatpush1.msra.mxu0 0.0
    %1482 = vmatprep.subr.mxu0 0.0
    %1483 = vmatpush1.msra.mxu0 0.0
    %1484 = vmatprep.subr.mxu0 0.0
    %1485 = vmatpush1.msra.mxu0 0.0
    %1486 = vmatprep.subr.mxu0 0.0
    %1487 = vmatpush1.msra.mxu0 0.0
    %1488 = vmatprep.subr.mxu0 0.0
    %1489 = vmatpush1.msra.mxu0 0.0
    %1490 = vmatprep.subr.mxu0 0.0
    %1491 = vmatpush1.msra.mxu0 0.0
    %1492 = vmatprep.subr.mxu0 0.0
    %1493 = vmatpush1.msra.mxu0 0.0
    %1494 = vmatprep.subr.mxu0 0.0
    %1495 = vmatpush1.msra.mxu0 0.0
    %1496 = vmatprep.mubr.f32.mxu0 0.0
    %1497 = vmatmul.mubr.f32.gmra.mrb[0].mxu0 %v1430
    %v1498 = vpop.f32.mrb[0].mxu0
    %v1499 = vadd.f32 0.0, %v1498
    %v1500 = vpop.f32.mrb[0].mxu0
    %1501 = vdwg.mxu0
    %v1502 = vsel %vm688, %v1425, -inf
    %1503 = vmax.xlane.f32.xlu0 %v1502
    %v1504 = vpop.xlane.xlu0 %1503
    %v1505 = vsel %vm688, %v1499, -inf
    %1506 = vmax.xlane.f32.xlu0 %v1505
    %v1507 = vpop.xlane.xlu0 %1506
    %v1508 = vsub.f32 %v1425, %v1504
    %v1509 = vsub.f32 %v1499, %v1507
    %v1510 = vmul.f32 %v1508, 1.442695
    %v1511 = vpow.pop %v1510
    %v1512 = vmul.f32 %v1509, 1.442695
    %v1513 = vpow.pop %v1512
    %v1514 = vsel %vm688, %v1511, 0.0
    %1515 = vadd.xlane.f32.xlu0 %v1514
    %v1516 = vpop.xlane.xlu0 %1515
    %v1517 = vsel %vm688, %v1513, 0.0
    %1518 = vadd.xlane.f32.xlu0 %v1517
    %v1519 = vpop.xlane.xlu0 %1518
    %1520 = vrot.lane.b32.xlu0 %v297, 112
    %v1521 = vpop.permute.xlu0 %1520
    %1522 = vrot.lane.b32.xlu0 %v302, 112
    %v1523 = vpop.permute.xlu0 %1522
    %v1527 = vsel %vm688, %v1511, 0
    %1529 = vmatprep.subr.mxu0 0.0
    %1530 = vmatpush1.msra.mxu0 %v1521
    %1531 = vmatprep.subr.mxu0 0.0
    %1532 = vmatpush1.msra.mxu0 %v1523
    %1533 = vmatprep.subr.mxu0 0.0
    %1534 = vmatpush1.msra.mxu0 0.0
    %1535 = vmatprep.subr.mxu0 0.0
    %1536 = vmatpush1.msra.mxu0 0.0
    %1537 = vmatprep.subr.mxu0 0.0
    %1538 = vmatpush1.msra.mxu0 0.0
    %1539 = vmatprep.subr.mxu0 0.0
    %1540 = vmatpush1.msra.mxu0 0.0
    %1541 = vmatprep.subr.mxu0 0.0
    %1542 = vmatpush1.msra.mxu0 0.0
    %1543 = vmatprep.subr.mxu0 0.0
    %1544 = vmatpush1.msra.mxu0 0.0
    %1545 = vmatprep.subr.mxu0 0.0
    %1546 = vmatpush1.msra.mxu0 0.0
    %1547 = vmatprep.subr.mxu0 0.0
    %1548 = vmatpush1.msra.mxu0 0.0
    %1549 = vmatprep.subr.mxu0 0.0
    %1550 = vmatpush1.msra.mxu0 0.0
    %1551 = vmatprep.subr.mxu0 0.0
    %1552 = vmatpush1.msra.mxu0 0.0
    %1553 = vmatprep.subr.mxu0 0.0
    %1554 = vmatpush1.msra.mxu0 0.0
    %1555 = vmatprep.subr.mxu0 0.0
    %1556 = vmatpush1.msra.mxu0 0.0
    %1557 = vmatprep.subr.mxu0 0.0
    %1558 = vmatpush1.msra.mxu0 0.0
    %1559 = vmatprep.subr.mxu0 0.0
    %1560 = vmatpush1.msra.mxu0 0.0
    %1561 = vmatprep.subr.mxu0 0.0
    %1562 = vmatpush1.msra.mxu0 0.0
    %1563 = vmatprep.subr.mxu0 0.0
    %1564 = vmatpush1.msra.mxu0 0.0
    %1565 = vmatprep.subr.mxu0 0.0
    %1566 = vmatpush1.msra.mxu0 0.0
    %1567 = vmatprep.subr.mxu0 0.0
    %1568 = vmatpush1.msra.mxu0 0.0
    %1569 = vmatprep.subr.mxu0 0.0
    %1570 = vmatpush1.msra.mxu0 0.0
    %1571 = vmatprep.subr.mxu0 0.0
    %1572 = vmatpush1.msra.mxu0 0.0
    %1573 = vmatprep.subr.mxu0 0.0
    %1574 = vmatpush1.msra.mxu0 0.0
    %1575 = vmatprep.subr.mxu0 0.0
    %1576 = vmatpush1.msra.mxu0 0.0
    %1577 = vmatprep.subr.mxu0 0.0
    %1578 = vmatpush1.msra.mxu0 0.0
    %1579 = vmatprep.subr.mxu0 0.0
    %1580 = vmatpush1.msra.mxu0 0.0
    %1581 = vmatprep.subr.mxu0 0.0
    %1582 = vmatpush1.msra.mxu0 0.0
    %1583 = vmatprep.subr.mxu0 0.0
    %1584 = vmatpush1.msra.mxu0 0.0
    %1585 = vmatprep.subr.mxu0 0.0
    %1586 = vmatpush1.msra.mxu0 0.0
    %1587 = vmatprep.subr.mxu0 0.0
    %1588 = vmatpush1.msra.mxu0 0.0
    %1589 = vmatprep.subr.mxu0 0.0
    %1590 = vmatpush1.msra.mxu0 0.0
    %1591 = vmatprep.subr.mxu0 0.0
    %1592 = vmatpush1.msra.mxu0 0.0
    %1593 = vmatprep.mubr.f32.mxu0 0.0
    %1594 = vmatmul.mubr.f32.gmra.mrb[0].mxu0 %v1527
    %v1595 = vpop.f32.mrb[0].mxu0
    %v1596 = vadd.f32 0.0, %v1595
    %v1597 = vpop.f32.mrb[0].mxu0
    %1598 = vdwg.mxu0
    %1599 = vrot.lane.b32.xlu0 %v307, 112
    %v1600 = vpop.permute.xlu0 %1599
    %1601 = vrot.lane.b32.xlu0 %v312, 112
    %v1602 = vpop.permute.xlu0 %1601
    %v1606 = vsel %vm688, %v1513, 0
    %1608 = vmatprep.subr.mxu0 0.0
    %1609 = vmatpush1.msra.mxu0 %v1600
    %1610 = vmatprep.subr.mxu0 0.0
    %1611 = vmatpush1.msra.mxu0 %v1602
    %1612 = vmatprep.subr.mxu0 0.0
    %1613 = vmatpush1.msra.mxu0 0.0
    %1614 = vmatprep.subr.mxu0 0.0
    %1615 = vmatpush1.msra.mxu0 0.0
    %1616 = vmatprep.subr.mxu0 0.0
    %1617 = vmatpush1.msra.mxu0 0.0
    %1618 = vmatprep.subr.mxu0 0.0
    %1619 = vmatpush1.msra.mxu0 0.0
    %1620 = vmatprep.subr.mxu0 0.0
    %1621 = vmatpush1.msra.mxu0 0.0
    %1622 = vmatprep.subr.mxu0 0.0
    %1623 = vmatpush1.msra.mxu0 0.0
    %1624 = vmatprep.subr.mxu0 0.0
    %1625 = vmatpush1.msra.mxu0 0.0
    %1626 = vmatprep.subr.mxu0 0.0
    %1627 = vmatpush1.msra.mxu0 0.0
    %1628 = vmatprep.subr.mxu0 0.0
    %1629 = vmatpush1.msra.mxu0 0.0
    %1630 = vmatprep.subr.mxu0 0.0
    %1631 = vmatpush1.msra.mxu0 0.0
    %1632 = vmatprep.subr.mxu0 0.0
    %1633 = vmatpush1.msra.mxu0 0.0
    %1634 = vmatprep.subr.mxu0 0.0
    %1635 = vmatpush1.msra.mxu0 0.0
    %1636 = vmatprep.subr.mxu0 0.0
    %1637 = vmatpush1.msra.mxu0 0.0
    %1638 = vmatprep.subr.mxu0 0.0
    %1639 = vmatpush1.msra.mxu0 0.0
    %1640 = vmatprep.subr.mxu0 0.0
    %1641 = vmatpush1.msra.mxu0 0.0
    %1642 = vmatprep.subr.mxu0 0.0
    %1643 = vmatpush1.msra.mxu0 0.0
    %1644 = vmatprep.subr.mxu0 0.0
    %1645 = vmatpush1.msra.mxu0 0.0
    %1646 = vmatprep.subr.mxu0 0.0
    %1647 = vmatpush1.msra.mxu0 0.0
    %1648 = vmatprep.subr.mxu0 0.0
    %1649 = vmatpush1.msra.mxu0 0.0
    %1650 = vmatprep.subr.mxu0 0.0
    %1651 = vmatpush1.msra.mxu0 0.0
    %1652 = vmatprep.subr.mxu0 0.0
    %1653 = vmatpush1.msra.mxu0 0.0
    %1654 = vmatprep.subr.mxu0 0.0
    %1655 = vmatpush1.msra.mxu0 0.0
    %1656 = vmatprep.subr.mxu0 0.0
    %1657 = vmatpush1.msra.mxu0 0.0
    %1658 = vmatprep.subr.mxu0 0.0
    %1659 = vmatpush1.msra.mxu0 0.0
    %1660 = vmatprep.subr.mxu0 0.0
    %1661 = vmatpush1.msra.mxu0 0.0
    %1662 = vmatprep.subr.mxu0 0.0
    %1663 = vmatpush1.msra.mxu0 0.0
    %1664 = vmatprep.subr.mxu0 0.0
    %1665 = vmatpush1.msra.mxu0 0.0
    %1666 = vmatprep.subr.mxu0 0.0
    %1667 = vmatpush1.msra.mxu0 0.0
    %1668 = vmatprep.subr.mxu0 0.0
    %1669 = vmatpush1.msra.mxu0 0.0
    %1670 = vmatprep.subr.mxu0 0.0
    %1671 = vmatpush1.msra.mxu0 0.0
    %1672 = vmatprep.mubr.f32.mxu0 0.0
    %1673 = vmatmul.mubr.f32.gmra.mrb[0].mxu0 %v1606
    %v1674 = vpop.f32.mrb[0].mxu0
    %v1675 = vadd.f32 0.0, %v1674
    %v1676 = vpop.f32.mrb[0].mxu0
    %1677 = vdwg.mxu0
    %v1678 = vrcp.pop %v1516
    %v1679 = vrcp.pop %v1519
    %v1680 = vmul.f32 %v1596, %v1678
    %v1681 = vmul.f32 %v1675, %v1679
    %s1682 = scalar_lea.vmem [#allocation8], 16
    %v1683 = vld [vmem:[%s1682] sm:$0xff]
    %v1685 = vsel %vm541, %v1680, 0
    %v1688 = vsel %vm541, %v1681, 0
    %1690 = vmatprep.subr.mxu0 0.0
    %1691 = vmatpush1.msra.mxu0 %v1683
    %1692 = vmatprep.subr.mxu0 0.0
    %1693 = vmatpush1.msra.mxu0 0.0
    %1694 = vmatprep.subr.mxu0 0.0
    %1695 = vmatpush1.msra.mxu0 0.0
    %1696 = vmatprep.subr.mxu0 0.0
    %1697 = vmatpush1.msra.mxu0 0.0
    %1698 = vmatprep.subr.mxu0 0.0
    %1699 = vmatpush1.msra.mxu0 0.0
    %1700 = vmatprep.subr.mxu0 0.0
    %1701 = vmatpush1.msra.mxu0 0.0
    %1702 = vmatprep.subr.mxu0 0.0
    %1703 = vmatpush1.msra.mxu0 0.0
    %1704 = vmatprep.subr.mxu0 0.0
    %1705 = vmatpush1.msra.mxu0 0.0
    %1706 = vmatprep.subr.mxu0 0.0
    %1707 = vmatpush1.msra.mxu0 0.0
    %1708 = vmatprep.subr.mxu0 0.0
    %1709 = vmatpush1.msra.mxu0 0.0
    %1710 = vmatprep.subr.mxu0 0.0
    %1711 = vmatpush1.msra.mxu0 0.0
    %1712 = vmatprep.subr.mxu0 0.0
    %1713 = vmatpush1.msra.mxu0 0.0
    %1714 = vmatprep.subr.mxu0 0.0
    %1715 = vmatpush1.msra.mxu0 0.0
    %1716 = vmatprep.subr.mxu0 0.0
    %1717 = vmatpush1.msra.mxu0 0.0
    %1718 = vmatprep.subr.mxu0 0.0
    %1719 = vmatpush1.msra.mxu0 0.0
    %1720 = vmatprep.subr.mxu0 0.0
    %1721 = vmatpush1.msra.mxu0 0.0
    %1722 = vmatprep.subr.mxu0 0.0
    %1723 = vmatpush1.msra.mxu0 0.0
    %1724 = vmatprep.subr.mxu0 0.0
    %1725 = vmatpush1.msra.mxu0 0.0
    %1726 = vmatprep.subr.mxu0 0.0
    %1727 = vmatpush1.msra.mxu0 0.0
    %1728 = vmatprep.subr.mxu0 0.0
    %1729 = vmatpush1.msra.mxu0 0.0
    %1730 = vmatprep.subr.mxu0 0.0
    %1731 = vmatpush1.msra.mxu0 0.0
    %1732 = vmatprep.subr.mxu0 0.0
    %1733 = vmatpush1.msra.mxu0 0.0
    %1734 = vmatprep.subr.mxu0 0.0
    %1735 = vmatpush1.msra.mxu0 0.0
    %1736 = vmatprep.subr.mxu0 0.0
    %1737 = vmatpush1.msra.mxu0 0.0
    %1738 = vmatprep.subr.mxu0 0.0
    %1739 = vmatpush1.msra.mxu0 0.0
    %1740 = vmatprep.subr.mxu0 0.0
    %1741 = vmatpush1.msra.mxu0 0.0
    %1742 = vmatprep.subr.mxu0 0.0
    %1743 = vmatpush1.msra.mxu0 0.0
    %1744 = vmatprep.subr.mxu0 0.0
    %1745 = vmatpush1.msra.mxu0 0.0
    %1746 = vmatprep.subr.mxu0 0.0
    %1747 = vmatpush1.msra.mxu0 0.0
    %1748 = vmatprep.subr.mxu0 0.0
    %1749 = vmatpush1.msra.mxu0 0.0
    %1750 = vmatprep.subr.mxu0 0.0
    %1751 = vmatpush1.msra.mxu0 0.0
    %1752 = vmatprep.subr.mxu0 0.0
    %1753 = vmatpush1.msra.mxu0 0.0
    %1754 = vmatprep.mubr.f32.mxu0 0.0
    %1755 = vmatmul.mubr.f32.gmra.mrb[0].mxu0 %v1685
    %v1756 = vpop.f32.mrb[0].mxu0
    %v1757 = vadd.f32 0.0, %v1756
    %v1758 = vpop.f32.mrb[0].mxu0
    %1759 = vmatprep.mubr.f32.mxu0 0.0
    %1760 = vmatmul.mubr.f32.gmra.mrb[0].mxu0 %v1688
    %v1761 = vpop.f32.mrb[0].mxu0
    %v1762 = vadd.f32 0.0, %v1761
    %v1763 = vpop.f32.mrb[0].mxu0
    %1764 = vdwg.mxu0
    %v1765 = vadd.f32 %v1346, %v1757
    %v1766 = vadd.f32 %v1351, %v1762
    %1767 = vrot.lane.b32.xlu0 %v199, 104
    %v1768 = vpop.permute.xlu0 %1767
    %v1769 = vsel %vm541, %v1768, 0
    %1771 = vmatprep.subr.mxu0 0.0
    %1772 = vmatpush1.msra.mxu0 %v441
    %1773 = vmatprep.subr.mxu0 0.0
    %1774 = vmatpush1.msra.mxu0 0.0
    %1775 = vmatprep.subr.mxu0 0.0
    %1776 = vmatpush1.msra.mxu0 0.0
    %1777 = vmatprep.subr.mxu0 0.0
    %1778 = vmatpush1.msra.mxu0 0.0
    %1779 = vmatprep.subr.mxu0 0.0
    %1780 = vmatpush1.msra.mxu0 0.0
    %1781 = vmatprep.subr.mxu0 0.0
    %1782 = vmatpush1.msra.mxu0 0.0
    %1783 = vmatprep.subr.mxu0 0.0
    %1784 = vmatpush1.msra.mxu0 0.0
    %1785 = vmatprep.subr.mxu0 0.0
    %1786 = vmatpush1.msra.mxu0 0.0
    %1787 = vmatprep.subr.mxu0 0.0
    %1788 = vmatpush1.msra.mxu0 0.0
    %1789 = vmatprep.subr.mxu0 0.0
    %1790 = vmatpush1.msra.mxu0 0.0
    %1791 = vmatprep.subr.mxu0 0.0
    %1792 = vmatpush1.msra.mxu0 0.0
    %1793 = vmatprep.subr.mxu0 0.0
    %1794 = vmatpush1.msra.mxu0 0.0
    %1795 = vmatprep.subr.mxu0 0.0
    %1796 = vmatpush1.msra.mxu0 0.0
    %1797 = vmatprep.subr.mxu0 0.0
    %1798 = vmatpush1.msra.mxu0 0.0
    %1799 = vmatprep.subr.mxu0 0.0
    %1800 = vmatpush1.msra.mxu0 0.0
    %1801 = vmatprep.subr.mxu0 0.0
    %1802 = vmatpush1.msra.mxu0 0.0
    %1803 = vmatprep.subr.mxu0 0.0
    %1804 = vmatpush1.msra.mxu0 0.0
    %1805 = vmatprep.subr.mxu0 0.0
    %1806 = vmatpush1.msra.mxu0 0.0
    %1807 = vmatprep.subr.mxu0 0.0
    %1808 = vmatpush1.msra.mxu0 0.0
    %1809 = vmatprep.subr.mxu0 0.0
    %1810 = vmatpush1.msra.mxu0 0.0
    %1811 = vmatprep.subr.mxu0 0.0
    %1812 = vmatpush1.msra.mxu0 0.0
    %1813 = vmatprep.subr.mxu0 0.0
    %1814 = vmatpush1.msra.mxu0 0.0
    %1815 = vmatprep.subr.mxu0 0.0
    %1816 = vmatpush1.msra.mxu0 0.0
    %1817 = vmatprep.subr.mxu0 0.0
    %1818 = vmatpush1.msra.mxu0 0.0
    %1819 = vmatprep.subr.mxu0 0.0
    %1820 = vmatpush1.msra.mxu0 0.0
    %1821 = vmatprep.subr.mxu0 0.0
    %1822 = vmatpush1.msra.mxu0 0.0
    %1823 = vmatprep.subr.mxu0 0.0
    %1824 = vmatpush1.msra.mxu0 0.0
    %1825 = vmatprep.subr.mxu0 0.0
    %1826 = vmatpush1.msra.mxu0 0.0
    %1827 = vmatprep.subr.mxu0 0.0
    %1828 = vmatpush1.msra.mxu0 0.0
    %1829 = vmatprep.subr.mxu0 0.0
    %1830 = vmatpush1.msra.mxu0 0.0
    %1831 = vmatprep.subr.mxu0 0.0
    %1832 = vmatpush1.msra.mxu0 0.0
    %1833 = vmatprep.subr.mxu0 0.0
    %1834 = vmatpush1.msra.mxu0 0.0
    %1835 = vmatprep.mubr.f32.mxu0 0.0
    %1836 = vmatmul.mubr.f32.gmra.mrb[0].mxu0 %v1769
    %v1837 = vpop.f32.mrb[0].mxu0
    %v1838 = vadd.f32 0.0, %v1837
    %v1839 = vpop.f32.mrb[0].mxu0
    %1840 = vdwg.mxu0
    %1841 = vrot.lane.b32.xlu0 %v204, 104
    %v1842 = vpop.permute.xlu0 %1841
    %v1843 = vsel %vm541, %v1842, 0
    %1845 = vmatprep.subr.mxu0 0.0
    %1846 = vmatpush1.msra.mxu0 %v538
    %1847 = vmatprep.subr.mxu0 0.0
    %1848 = vmatpush1.msra.mxu0 0.0
    %1849 = vmatprep.subr.mxu0 0.0
    %1850 = vmatpush1.msra.mxu0 0.0
    %1851 = vmatprep.subr.mxu0 0.0
    %1852 = vmatpush1.msra.mxu0 0.0
    %1853 = vmatprep.subr.mxu0 0.0
    %1854 = vmatpush1.msra.mxu0 0.0
    %1855 = vmatprep.subr.mxu0 0.0
    %1856 = vmatpush1.msra.mxu0 0.0
    %1857 = vmatprep.subr.mxu0 0.0
    %1858 = vmatpush1.msra.mxu0 0.0
    %1859 = vmatprep.subr.mxu0 0.0
    %1860 = vmatpush1.msra.mxu0 0.0
    %1861 = vmatprep.subr.mxu0 0.0
    %1862 = vmatpush1.msra.mxu0 0.0
    %1863 = vmatprep.subr.mxu0 0.0
    %1864 = vmatpush1.msra.mxu0 0.0
    %1865 = vmatprep.subr.mxu0 0.0
    %1866 = vmatpush1.msra.mxu0 0.0
    %1867 = vmatprep.subr.mxu0 0.0
    %1868 = vmatpush1.msra.mxu0 0.0
    %1869 = vmatprep.subr.mxu0 0.0
    %1870 = vmatpush1.msra.mxu0 0.0
    %1871 = vmatprep.subr.mxu0 0.0
    %1872 = vmatpush1.msra.mxu0 0.0
    %1873 = vmatprep.subr.mxu0 0.0
    %1874 = vmatpush1.msra.mxu0 0.0
    %1875 = vmatprep.subr.mxu0 0.0
    %1876 = vmatpush1.msra.mxu0 0.0
    %1877 = vmatprep.subr.mxu0 0.0
    %1878 = vmatpush1.msra.mxu0 0.0
    %1879 = vmatprep.subr.mxu0 0.0
    %1880 = vmatpush1.msra.mxu0 0.0
    %1881 = vmatprep.subr.mxu0 0.0
    %1882 = vmatpush1.msra.mxu0 0.0
    %1883 = vmatprep.subr.mxu0 0.0
    %1884 = vmatpush1.msra.mxu0 0.0
    %1885 = vmatprep.subr.mxu0 0.0
    %1886 = vmatpush1.msra.mxu0 0.0
    %1887 = vmatprep.subr.mxu0 0.0
    %1888 = vmatpush1.msra.mxu0 0.0
    %1889 = vmatprep.subr.mxu0 0.0
    %1890 = vmatpush1.msra.mxu0 0.0
    %1891 = vmatprep.subr.mxu0 0.0
    %1892 = vmatpush1.msra.mxu0 0.0
    %1893 = vmatprep.subr.mxu0 0.0
    %1894 = vmatpush1.msra.mxu0 0.0
    %1895 = vmatprep.subr.mxu0 0.0
    %1896 = vmatpush1.msra.mxu0 0.0
    %1897 = vmatprep.subr.mxu0 0.0
    %1898 = vmatpush1.msra.mxu0 0.0
    %1899 = vmatprep.subr.mxu0 0.0
    %1900 = vmatpush1.msra.mxu0 0.0
    %1901 = vmatprep.subr.mxu0 0.0
    %1902 = vmatpush1.msra.mxu0 0.0
    %1903 = vmatprep.subr.mxu0 0.0
    %1904 = vmatpush1.msra.mxu0 0.0
    %1905 = vmatprep.subr.mxu0 0.0
    %1906 = vmatpush1.msra.mxu0 0.0
    %1907 = vmatprep.subr.mxu0 0.0
    %1908 = vmatpush1.msra.mxu0 0.0
    %1909 = vmatprep.mubr.f32.mxu0 0.0
    %1910 = vmatmul.mubr.f32.gmra.mrb[0].mxu0 %v1843
    %v1911 = vpop.f32.mrb[0].mxu0
    %v1912 = vadd.f32 0.0, %v1911
    %v1913 = vpop.f32.mrb[0].mxu0
    %1914 = vdwg.mxu0
    %v1915 = vsel %vm688, %v1838, -inf
    %1916 = vmax.xlane.f32.xlu0 %v1915
    %v1917 = vpop.xlane.xlu0 %1916
    %v1918 = vsel %vm688, %v1912, -inf
    %1919 = vmax.xlane.f32.xlu0 %v1918
    %v1920 = vpop.xlane.xlu0 %1919
    %v1921 = vsub.f32 %v1838, %v1917
    %v1922 = vsub.f32 %v1912, %v1920
    %v1923 = vmul.f32 %v1921, 1.442695
    %v1924 = vpow.pop %v1923
    %v1925 = vmul.f32 %v1922, 1.442695
    %v1926 = vpow.pop %v1925
    %v1927 = vsel %vm688, %v1924, 0.0
    %1928 = vadd.xlane.f32.xlu0 %v1927
    %v1929 = vpop.xlane.xlu0 %1928
    %v1930 = vsel %vm688, %v1926, 0.0
    %1931 = vadd.xlane.f32.xlu0 %v1930
    %v1932 = vpop.xlane.xlu0 %1931
    %1933 = vrot.lane.b32.xlu0 %v297, 104
    %v1934 = vpop.permute.xlu0 %1933
    %1935 = vrot.lane.b32.xlu0 %v302, 104
    %v1936 = vpop.permute.xlu0 %1935
    %v1940 = vsel %vm688, %v1924, 0
    %1942 = vmatprep.subr.mxu0 0.0
    %1943 = vmatpush1.msra.mxu0 %v1934
    %1944 = vmatprep.subr.mxu0 0.0
    %1945 = vmatpush1.msra.mxu0 %v1936
    %1946 = vmatprep.subr.mxu0 0.0
    %1947 = vmatpush1.msra.mxu0 0.0
    %1948 = vmatprep.subr.mxu0 0.0
    %1949 = vmatpush1.msra.mxu0 0.0
    %1950 = vmatprep.subr.mxu0 0.0
    %1951 = vmatpush1.msra.mxu0 0.0
    %1952 = vmatprep.subr.mxu0 0.0
    %1953 = vmatpush1.msra.mxu0 0.0
    %1954 = vmatprep.subr.mxu0 0.0
    %1955 = vmatpush1.msra.mxu0 0.0
    %1956 = vmatprep.subr.mxu0 0.0
    %1957 = vmatpush1.msra.mxu0 0.0
    %1958 = vmatprep.subr.mxu0 0.0
    %1959 = vmatpush1.msra.mxu0 0.0
    %1960 = vmatprep.subr.mxu0 0.0
    %1961 = vmatpush1.msra.mxu0 0.0
    %1962 = vmatprep.subr.mxu0 0.0
    %1963 = vmatpush1.msra.mxu0 0.0
    %1964 = vmatprep.subr.mxu0 0.0
    %1965 = vmatpush1.msra.mxu0 0.0
    %1966 = vmatprep.subr.mxu0 0.0
    %1967 = vmatpush1.msra.mxu0 0.0
    %1968 = vmatprep.subr.mxu0 0.0
    %1969 = vmatpush1.msra.mxu0 0.0
    %1970 = vmatprep.subr.mxu0 0.0
    %1971 = vmatpush1.msra.mxu0 0.0
    %1972 = vmatprep.subr.mxu0 0.0
    %1973 = vmatpush1.msra.mxu0 0.0
    %1974 = vmatprep.subr.mxu0 0.0
    %1975 = vmatpush1.msra.mxu0 0.0
    %1976 = vmatprep.subr.mxu0 0.0
    %1977 = vmatpush1.msra.mxu0 0.0
    %1978 = vmatprep.subr.mxu0 0.0
    %1979 = vmatpush1.msra.mxu0 0.0
    %1980 = vmatprep.subr.mxu0 0.0
    %1981 = vmatpush1.msra.mxu0 0.0
    %1982 = vmatprep.subr.mxu0 0.0
    %1983 = vmatpush1.msra.mxu0 0.0
    %1984 = vmatprep.subr.mxu0 0.0
    %1985 = vmatpush1.msra.mxu0 0.0
    %1986 = vmatprep.subr.mxu0 0.0
    %1987 = vmatpush1.msra.mxu0 0.0
    %1988 = vmatprep.subr.mxu0 0.0
    %1989 = vmatpush1.msra.mxu0 0.0
    %1990 = vmatprep.subr.mxu0 0.0
    %1991 = vmatpush1.msra.mxu0 0.0
    %1992 = vmatprep.subr.mxu0 0.0
    %1993 = vmatpush1.msra.mxu0 0.0
    %1994 = vmatprep.subr.mxu0 0.0
    %1995 = vmatpush1.msra.mxu0 0.0
    %1996 = vmatprep.subr.mxu0 0.0
    %1997 = vmatpush1.msra.mxu0 0.0
    %1998 = vmatprep.subr.mxu0 0.0
    %1999 = vmatpush1.msra.mxu0 0.0
    %2000 = vmatprep.subr.mxu0 0.0
    %2001 = vmatpush1.msra.mxu0 0.0
    %2002 = vmatprep.subr.mxu0 0.0
    %2003 = vmatpush1.msra.mxu0 0.0
    %2004 = vmatprep.subr.mxu0 0.0
    %2005 = vmatpush1.msra.mxu0 0.0
    %2006 = vmatprep.mubr.f32.mxu0 0.0
    %2007 = vmatmul.mubr.f32.gmra.mrb[0].mxu0 %v1940
    %v2008 = vpop.f32.mrb[0].mxu0
    %v2009 = vadd.f32 0.0, %v2008
    %v2010 = vpop.f32.mrb[0].mxu0
    %2011 = vdwg.mxu0
    %2012 = vrot.lane.b32.xlu0 %v307, 104
    %v2013 = vpop.permute.xlu0 %2012
    %2014 = vrot.lane.b32.xlu0 %v312, 104
    %v2015 = vpop.permute.xlu0 %2014
    %v2019 = vsel %vm688, %v1926, 0
    %2021 = vmatprep.subr.mxu0 0.0
    %2022 = vmatpush1.msra.mxu0 %v2013
    %2023 = vmatprep.subr.mxu0 0.0
    %2024 = vmatpush1.msra.mxu0 %v2015
    %2025 = vmatprep.subr.mxu0 0.0
    %2026 = vmatpush1.msra.mxu0 0.0
    %2027 = vmatprep.subr.mxu0 0.0
    %2028 = vmatpush1.msra.mxu0 0.0
    %2029 = vmatprep.subr.mxu0 0.0
    %2030 = vmatpush1.msra.mxu0 0.0
    %2031 = vmatprep.subr.mxu0 0.0
    %2032 = vmatpush1.msra.mxu0 0.0
    %2033 = vmatprep.subr.mxu0 0.0
    %2034 = vmatpush1.msra.mxu0 0.0
    %2035 = vmatprep.subr.mxu0 0.0
    %2036 = vmatpush1.msra.mxu0 0.0
    %2037 = vmatprep.subr.mxu0 0.0
    %2038 = vmatpush1.msra.mxu0 0.0
    %2039 = vmatprep.subr.mxu0 0.0
    %2040 = vmatpush1.msra.mxu0 0.0
    %2041 = vmatprep.subr.mxu0 0.0
    %2042 = vmatpush1.msra.mxu0 0.0
    %2043 = vmatprep.subr.mxu0 0.0
    %2044 = vmatpush1.msra.mxu0 0.0
    %2045 = vmatprep.subr.mxu0 0.0
    %2046 = vmatpush1.msra.mxu0 0.0
    %2047 = vmatprep.subr.mxu0 0.0
    %2048 = vmatpush1.msra.mxu0 0.0
    %2049 = vmatprep.subr.mxu0 0.0
    %2050 = vmatpush1.msra.mxu0 0.0
    %2051 = vmatprep.subr.mxu0 0.0
    %2052 = vmatpush1.msra.mxu0 0.0
    %2053 = vmatprep.subr.mxu0 0.0
    %2054 = vmatpush1.msra.mxu0 0.0
    %2055 = vmatprep.subr.mxu0 0.0
    %2056 = vmatpush1.msra.mxu0 0.0
    %2057 = vmatprep.subr.mxu0 0.0
    %2058 = vmatpush1.msra.mxu0 0.0
    %2059 = vmatprep.subr.mxu0 0.0
    %2060 = vmatpush1.msra.mxu0 0.0
    %2061 = vmatprep.subr.mxu0 0.0
    %2062 = vmatpush1.msra.mxu0 0.0
    %2063 = vmatprep.subr.mxu0 0.0
    %2064 = vmatpush1.msra.mxu0 0.0
    %2065 = vmatprep.subr.mxu0 0.0
    %2066 = vmatpush1.msra.mxu0 0.0
    %2067 = vmatprep.subr.mxu0 0.0
    %2068 = vmatpush1.msra.mxu0 0.0
    %2069 = vmatprep.subr.mxu0 0.0
    %2070 = vmatpush1.msra.mxu0 0.0
    %2071 = vmatprep.subr.mxu0 0.0
    %2072 = vmatpush1.msra.mxu0 0.0
    %2073 = vmatprep.subr.mxu0 0.0
    %2074 = vmatpush1.msra.mxu0 0.0
    %2075 = vmatprep.subr.mxu0 0.0
    %2076 = vmatpush1.msra.mxu0 0.0
    %2077 = vmatprep.subr.mxu0 0.0
    %2078 = vmatpush1.msra.mxu0 0.0
    %2079 = vmatprep.subr.mxu0 0.0
    %2080 = vmatpush1.msra.mxu0 0.0
    %2081 = vmatprep.subr.mxu0 0.0
    %2082 = vmatpush1.msra.mxu0 0.0
    %2083 = vmatprep.subr.mxu0 0.0
    %2084 = vmatpush1.msra.mxu0 0.0
    %2085 = vmatprep.mubr.f32.mxu0 0.0
    %2086 = vmatmul.mubr.f32.gmra.mrb[0].mxu0 %v2019
    %v2087 = vpop.f32.mrb[0].mxu0
    %v2088 = vadd.f32 0.0, %v2087
    %v2089 = vpop.f32.mrb[0].mxu0
    %2090 = vdwg.mxu0
    %v2091 = vrcp.pop %v1929
    %v2092 = vrcp.pop %v1932
    %v2093 = vmul.f32 %v2009, %v2091
    %v2094 = vmul.f32 %v2088, %v2092
    %s2095 = scalar_lea.vmem [#allocation8], 24
    %v2096 = vld [vmem:[%s2095] sm:$0xff]
    %v2098 = vsel %vm541, %v2093, 0
    %v2101 = vsel %vm541, %v2094, 0
    %2103 = vmatprep.subr.mxu0 0.0
    %2104 = vmatpush1.msra.mxu0 %v2096
    %2105 = vmatprep.subr.mxu0 0.0
    %2106 = vmatpush1.msra.mxu0 0.0
    %2107 = vmatprep.subr.mxu0 0.0
    %2108 = vmatpush1.msra.mxu0 0.0
    %2109 = vmatprep.subr.mxu0 0.0
    %2110 = vmatpush1.msra.mxu0 0.0
    %2111 = vmatprep.subr.mxu0 0.0
    %2112 = vmatpush1.msra.mxu0 0.0
    %2113 = vmatprep.subr.mxu0 0.0
    %2114 = vmatpush1.msra.mxu0 0.0
    %2115 = vmatprep.subr.mxu0 0.0
    %2116 = vmatpush1.msra.mxu0 0.0
    %2117 = vmatprep.subr.mxu0 0.0
    %2118 = vmatpush1.msra.mxu0 0.0
    %2119 = vmatprep.subr.mxu0 0.0
    %2120 = vmatpush1.msra.mxu0 0.0
    %2121 = vmatprep.subr.mxu0 0.0
    %2122 = vmatpush1.msra.mxu0 0.0
    %2123 = vmatprep.subr.mxu0 0.0
    %2124 = vmatpush1.msra.mxu0 0.0
    %2125 = vmatprep.subr.mxu0 0.0
    %2126 = vmatpush1.msra.mxu0 0.0
    %2127 = vmatprep.subr.mxu0 0.0
    %2128 = vmatpush1.msra.mxu0 0.0
    %2129 = vmatprep.subr.mxu0 0.0
    %2130 = vmatpush1.msra.mxu0 0.0
    %2131 = vmatprep.subr.mxu0 0.0
    %2132 = vmatpush1.msra.mxu0 0.0
    %2133 = vmatprep.subr.mxu0 0.0
    %2134 = vmatpush1.msra.mxu0 0.0
    %2135 = vmatprep.subr.mxu0 0.0
    %2136 = vmatpush1.msra.mxu0 0.0
    %2137 = vmatprep.subr.mxu0 0.0
    %2138 = vmatpush1.msra.mxu0 0.0
    %2139 = vmatprep.subr.mxu0 0.0
    %2140 = vmatpush1.msra.mxu0 0.0
    %2141 = vmatprep.subr.mxu0 0.0
    %2142 = vmatpush1.msra.mxu0 0.0
    %2143 = vmatprep.subr.mxu0 0.0
    %2144 = vmatpush1.msra.mxu0 0.0
    %2145 = vmatprep.subr.mxu0 0.0
    %2146 = vmatpush1.msra.mxu0 0.0
    %2147 = vmatprep.subr.mxu0 0.0
    %2148 = vmatpush1.msra.mxu0 0.0
    %2149 = vmatprep.subr.mxu0 0.0
    %2150 = vmatpush1.msra.mxu0 0.0
    %2151 = vmatprep.subr.mxu0 0.0
    %2152 = vmatpush1.msra.mxu0 0.0
    %2153 = vmatprep.subr.mxu0 0.0
    %2154 = vmatpush1.msra.mxu0 0.0
    %2155 = vmatprep.subr.mxu0 0.0
    %2156 = vmatpush1.msra.mxu0 0.0
    %2157 = vmatprep.subr.mxu0 0.0
    %2158 = vmatpush1.msra.mxu0 0.0
    %2159 = vmatprep.subr.mxu0 0.0
    %2160 = vmatpush1.msra.mxu0 0.0
    %2161 = vmatprep.subr.mxu0 0.0
    %2162 = vmatpush1.msra.mxu0 0.0
    %2163 = vmatprep.subr.mxu0 0.0
    %2164 = vmatpush1.msra.mxu0 0.0
    %2165 = vmatprep.subr.mxu0 0.0
    %2166 = vmatpush1.msra.mxu0 0.0
    %2167 = vmatprep.mubr.f32.mxu0 0.0
    %2168 = vmatmul.mubr.f32.gmra.mrb[0].mxu0 %v2098
    %v2169 = vpop.f32.mrb[0].mxu0
    %v2170 = vadd.f32 0.0, %v2169
    %v2171 = vpop.f32.mrb[0].mxu0
    %2172 = vmatprep.mubr.f32.mxu0 0.0
    %2173 = vmatmul.mubr.f32.gmra.mrb[0].mxu0 %v2101
    %v2174 = vpop.f32.mrb[0].mxu0
    %v2175 = vadd.f32 0.0, %v2174
    %v2176 = vpop.f32.mrb[0].mxu0
    %2177 = vdwg.mxu0
    %v2178 = vadd.f32 %v1765, %v2170
    %v2179 = vadd.f32 %v1766, %v2175
    %v2180 = vadd.f32 %v100, %v2178
    %v2181 = vadd.f32 %v101, %v2179
    %v2182 = vld [vmem:[%s10] sm:$0x1]
    %v2184 = vlaneseq
    %v2185 = vshrl.u32 %v2184, 7
    %v2186 = vsub.s32 0, %v2185
    %v2187 = vrot.slane %v2182, %v2186
    %v2189 = vadd.f32 %v2180, %v2187
    %v2190 = vadd.f32 %v2181, %v2187
    %v2191 = vsel %vm125, %v2189, 0.0
    %2192 = vadd.xlane.f32.xlu0 %v2191
    %v2193 = vpop.xlane.xlu0 %2192
    %v2194 = vsel %vm125, %v2190, 0.0
    %2195 = vadd.xlane.f32.xlu0 %v2194
    %v2196 = vpop.xlane.xlu0 %2195
    %v2197 = vrcp.pop 32.0
    %v2198 = vmul.f32 %v2193, %v2197
    %v2199 = vmul.f32 %v2196, %v2197
    %v2200 = vsub.f32 %v2189, %v2198
    %v2201 = vsub.f32 %v2190, %v2199
    %v2202 = vmul.f32 %v2200, %v2200
    %v2203 = vmul.f32 %v2201, %v2201
    %v2204 = vsel %vm125, %v2202, 0.0
    %2205 = vadd.xlane.f32.xlu0 %v2204
    %v2206 = vpop.xlane.xlu0 %2205
    %v2207 = vsel %vm125, %v2203, 0.0
    %2208 = vadd.xlane.f32.xlu0 %v2207
    %v2209 = vpop.xlane.xlu0 %2208
    %v2210 = vmul.f32 %v2206, %v2197
    %v2211 = vmul.f32 %v2209, %v2197
    %v2212 = vadd.f32 %v2210, 1e-05
    %v2213 = vadd.f32 %v2211, 1e-05
    %v2214 = vrsqrt.pop %v2212
    %v2215 = vrsqrt.pop %v2213
    %v2216 = vmul.f32 %v2200, %v2214
    %v2217 = vmul.f32 %v2201, %v2215
    %v2218 = vld [vmem:[%s11] sm:$0x1]
    %v2220 = vlaneseq
    %v2221 = vshrl.u32 %v2220, 7
    %v2222 = vsub.s32 0, %v2221
    %v2223 = vrot.slane %v2218, %v2222
    %v2225 = vmul.f32 %v2216, %v2223
    %v2226 = vmul.f32 %v2217, %v2223
    %v2227 = vld [vmem:[%s12] sm:$0x1]
    %v2229 = vlaneseq
    %v2230 = vshrl.u32 %v2229, 7
    %v2231 = vsub.s32 0, %v2230
    %v2232 = vrot.slane %v2227, %v2231
    %v2234 = vadd.f32 %v2225, %v2232
    %v2235 = vadd.f32 %v2226, %v2232
    %2236 = vst.msk [vmem:[#allocation10] sm:$0xff] %vm125, %v2234
    %2237 = vst.msk [vmem:[#allocation10 + $0x8] sm:$0xff] %vm125, %v2235
    // Predicated region
    $region70: #{tpu_custom_call.1} parent=1 // pred_check
      _
    $region71: #{tpu_custom_call.1} parent=1 // pred_check_branch
      %2239 = sbr.rel (0) target = $region73
    $region72: #{tpu_custom_call.1} parent=1 // pred_region
      %s2241 = ssub.s32 256, 256
      %2242 = vsyncadd [#allocation4], %s2241
      %s2243 = sshll.u32 [#allocation10], 4
      %s2244 = int_to_ptr.vmem [resolvable:$true] %s2243
      %2249 = dma.vmem_to_hbm [thread:$0]  %s2244, 256, %s13, [#allocation4], 128, 128, 8
    $region73: #{tpu_custom_call.1} parent=1 // pred_fallthru
      _
    // Predicated region
    $region74: #{tpu_custom_call.1} parent=1 // pred_check
      _
    $region75: #{tpu_custom_call.1} parent=1 // pred_check_branch
      %2251 = sbr.rel (0) target = $region77
    $region76: #{tpu_custom_call.1} parent=1 // pred_region
      %2252 = dma.done [#allocation4], 256
    $region77: #{tpu_custom_call.1} parent=1 // pred_fallthru
      _
    %2253 = vsyncpa [#allocation3], 1
    %2254 = vsyncpa [#allocation6], 1
    %2255 = vsyncpa [#allocation9], 1
    %2256 = vsyncpa [#allocation4], 1

</llo_original>
